<compile_context>
chip_gen: v7x
topology: tpu7x:2x2x1
jax: 0.10.0
libtpu: 0.0.40
codegen_flags: <defaults>
</compile_context>

<pallas_src>
import jax
import jax.numpy as jnp
from jax.experimental import pallas as pl
from jax.experimental.pallas import tpu as pltpu

# ----- model dims (implied by Conv2d(1,16,3) on 10x10 and Linear(16*8*8, 3)) -----
B = 2
H = W = 10
KH = KW = 3
OH, OW = H - KH + 1, W - KW + 1          # 8, 8
HW = OH * OW                             # 64
C_OUT = 16
FC_IN = C_OUT * HW                       # 1024
FC_OUT = 3
LANES = B * HW                           # 128: batch folded into the lane dim
K_PAD = 16                               # 9 conv taps padded to 16 for clean MXU K

assert LANES == 128, "batch*spatial must fill exactly one 128-lane vreg row"

# Packed parameter slab (PRM_ROWS, 128) f32 — row offsets:
ROW_WC = 0                               # [ 0:16)  conv weight (16,9), zero-padded lanes
ROW_BC = ROW_WC + C_OUT                  # [16:32)  conv bias broadcast over 128 lanes
ROW_WF = ROW_BC + C_OUT                  # [32:80)  fc weight: row n*16+c, lane b*64+h
ROW_SEG = ROW_WF + FC_OUT * C_OUT        # [80:82)  segment row b = 1 on lanes [b*64,(b+1)*64)
ROW_BF = ROW_SEG + B                     # [82:83)  fc bias in lanes 0..2
PRM_ROWS = 88                            # padded to a multiple of 8 sublanes
OUT_ROWS, OUT_LANES = 8, 128             # lane-dense padded output block


# --------------------------- fused Pallas kernel -----------------------------

def fused_kernel(pT_ref, prm_ref, o_ref):
    """Conv(3x3)+bias+ReLU -> flatten -> Linear, fully on-chip.

    pT_ref : (16, 128) im2col patches; row k = kh*3+kw (rows 9..15 zero),
             lane index = b*64 + oh*8 + ow.
    prm_ref: (88, 128) packed parameters (see ROW_* offsets).
    o_ref  : (8, 128) padded output; logical result lives at [:B, :3].
    """
    # Conv as one MXU matmul: (16,16) @ (16,128) -> (16, B*64), channel-major,
    # lane-dense. HIGHEST keeps f32 accuracy (DEFAULT misses the 1e-4 check).
    wcT = prm_ref[ROW_WC:ROW_WC + C_OUT, 0:K_PAD]                     # (16, 16)
    actT = jnp.dot(wcT, pT_ref[...],
                   preferred_element_type=jnp.float32,
                   precision=jax.lax.Precision.HIGHEST)                # (16, 128)
    actT = jnp.maximum(actT + prm_ref[ROW_BC:ROW_BC + C_OUT, :], 0.0)

    # FC, vectorized over the lane (batch*spatial) dim:
    # cols[n, b*64+h] = sum_c actT[c, b*64+h] * W_fc[n, c*64+h]
    # -> per output neuron: one VPU multiply + one sublane reduction.
    cols = []
    for n in range(FC_OUT):
        wf_n = prm_ref[ROW_WF + n * C_OUT:ROW_WF + (n + 1) * C_OUT, :]  # (16, 128)
        cols.append(jnp.sum(actT * wf_n, axis=0, keepdims=True))        # (1, 128)
    cols = jnp.concatenate(cols, axis=0)                                 # (3, 128)

    # Segmented per-batch lane sum + (b, n) placement in ONE tiny MXU matmul:
    # out[b, n] = sum_l seg[b, l] * cols[n, l], seg[b] = 1 on batch-b lanes.
    seg = prm_ref[ROW_SEG:ROW_SEG + B, :]                                # (B, 128)
    out_bn = jax.lax.dot_general(
        seg, cols, (((1,), (1,)), ((), ())),
        preferred_element_type=jnp.float32,
        precision=jax.lax.Precision.HIGHEST)                             # (B, 3)
    out_bn = out_bn + prm_ref[ROW_BF:ROW_BF + 1, 0:FC_OUT]               # + fc bias

    # Lane-dense padded store; wrapper slices [:B, :3].
    o_ref[...] = jnp.zeros_like(o_ref)
    o_ref[0:B, 0:FC_OUT] = out_bn


# --------------------------- wrapper ------------------------------------------

def _im2col_T(x):
    """(B,1,10,10) -> (16, B*64); row k = kh*3+kw (rows 9..15 zero),
    lane = b*64 + oh*8 + ow (matches PyTorch .view flatten order)."""
    cols = []
    for kh in range(KH):
        for kw in range(KW):
            cols.append(x[:, 0, kh:kh + OH, kw:kw + OW].reshape(B * HW))
    pT = jnp.stack(cols, axis=0)                                         # (9, 128)
    return jnp.pad(pT, ((0, K_PAD - KH * KW), (0, 0)))                   # (16, 128)


def _pack_params(w_conv, b_conv, w_fc, b_fc):
    """Pack all parameters into one (88, 128) f32 slab -> a single input DMA."""
    wc = jnp.pad(w_conv.reshape(C_OUT, KH * KW).astype(jnp.float32),
                 ((0, 0), (0, LANES - KH * KW)))                         # (16, 128)
    bc = jnp.broadcast_to(b_conv.astype(jnp.float32).reshape(C_OUT, 1),
                          (C_OUT, LANES))                                # (16, 128)
    # fc weight pre-tiled over batch: row n*16+c, lane b*64+h -> W_fc[n, c*64+h]
    wf = jnp.tile(w_fc.astype(jnp.float32).reshape(FC_OUT, C_OUT, HW),
                  (1, 1, B)).reshape(FC_OUT * C_OUT, LANES)              # (48, 128)
    seg = jnp.repeat(jnp.eye(B, dtype=jnp.float32), HW, axis=1)          # (2, 128)
    bf = jnp.pad(b_fc.astype(jnp.float32).reshape(1, FC_OUT),
                 ((0, 0), (0, LANES - FC_OUT)))                          # (1, 128)
    slab = jnp.concatenate([wc, bc, wf, seg, bf], axis=0)                # (83, 128)
    return jnp.pad(slab, ((0, PRM_ROWS - slab.shape[0]), (0, 0)))        # (88, 128)


def audio_cnn_forward(x, w_conv, b_conv, w_fc, b_fc):
    """Forward pass matching AudioCNNModel.forward. Returns (B, 3)."""
    # Hard-coded layout assumptions -> fail loudly instead of silently wrong.
    assert x.shape == (B, 1, H, W), x.shape
    assert w_conv.shape == (C_OUT, 1, KH, KW), w_conv.shape
    assert b_conv.shape == (C_OUT,), b_conv.shape
    assert w_fc.shape == (FC_OUT, FC_IN), w_fc.shape
    assert b_fc.shape == (FC_OUT,), b_fc.shape

    pT = _im2col_T(x)                                                    # (16, 128)
    prm = _pack_params(w_conv, b_conv, w_fc, b_fc)                       # (88, 128)

    cost = pl.CostEstimate(
        flops=2 * C_OUT * K_PAD * LANES            # conv matmul
              + 4 * C_OUT * LANES                  # bias + relu
              + 3 * FC_OUT * C_OUT * LANES         # fc multiply + sublane reduce
              + 2 * B * FC_OUT * LANES,            # segment-sum matmul
        transcendentals=0,
        bytes_accessed=(K_PAD * LANES + PRM_ROWS * LANES
                        + OUT_ROWS * OUT_LANES) * 4)

    out_padded = pl.pallas_call(
        fused_kernel,
        out_shape=jax.ShapeDtypeStruct((OUT_ROWS, OUT_LANES), jnp.float32),
        in_specs=[pl.BlockSpec(memory_space=pltpu.MemorySpace.VMEM),
                  pl.BlockSpec(memory_space=pltpu.MemorySpace.VMEM)],
        out_specs=pl.BlockSpec(memory_space=pltpu.MemorySpace.VMEM),
        compiler_params=pltpu.CompilerParams(
            # Let XLA fuse the im2col / param-packing producers straight into
            # the custom call (no separate fusion launch, no HBM round-trip).
            allow_input_fusion=[True, True]),
        cost_estimate=cost,
    )(pT, prm)
    return out_padded[:B, :FC_OUT]


# --------------------------- reference + main ---------------------------------

def reference_forward(x, w_conv, b_conv, w_fc, b_fc):
    y = jax.lax.conv_general_dilated(
        x, w_conv, window_strides=(1, 1), padding="VALID",
        dimension_numbers=("NCHW", "OIHW", "NCHW"),
        precision=jax.lax.Precision.HIGHEST)
    y = jax.nn.relu(y + b_conv.reshape(1, C_OUT, 1, 1))
    y = y.reshape(B, -1)
    return jnp.dot(y, w_fc.T, precision=jax.lax.Precision.HIGHEST) + b_fc


if __name__ == "__main__":
    key = jax.random.PRNGKey(0)
    k_x, k_wc, k_bc, k_wf, k_bf = jax.random.split(key, 5)

    x = jax.random.normal(k_x, (B, 1, H, W), dtype=jnp.float32)
    w_conv = jax.random.normal(k_wc, (C_OUT, 1, KH, KW), dtype=jnp.float32) * 0.1
    b_conv = jax.random.normal(k_bc, (C_OUT,), dtype=jnp.float32) * 0.1
    w_fc = jax.random.normal(k_wf, (FC_OUT, FC_IN), dtype=jnp.float32) * 0.05
    b_fc = jax.random.normal(k_bf, (FC_OUT,), dtype=jnp.float32) * 0.05

    out = jax.jit(audio_cnn_forward)(x, w_conv, b_conv, w_fc, b_fc)
    out = jax.block_until_ready(out)

    ref = reference_forward(x, w_conv, b_conv, w_fc, b_fc)
    assert out.shape == (B, FC_OUT), out.shape
    assert jnp.allclose(out, ref, atol=1e-4, rtol=1e-4), (out, ref)

    print("KERNEL_OK")
</pallas_src>

<mosaic_0001>
module attributes {stable_mosaic.version = 11 : i64} {
  func.func @fused_kernel(%arg0: memref<16x128xf32, #tpu.memory_space<vmem>>, %arg1: memref<88x128xf32, #tpu.memory_space<vmem>>, %arg2: memref<8x128xf32, #tpu.memory_space<vmem>>) attributes {dimension_semantics = [], scalar_prefetch = 0 : i64, scratch_operands = 0 : i64, tpu.core_type = #tpu.core_type<tc>} {
    %c0 = arith.constant 0 : index
    %c0_0 = arith.constant 0 : index
    %0 = vector.load %arg1[%c0, %c0_0] : memref<88x128xf32, #tpu.memory_space<vmem>>, vector<16x16xf32>
    %c0_1 = arith.constant 0 : index
    %c0_2 = arith.constant 0 : index
    %1 = vector.load %arg0[%c0_1, %c0_2] : memref<16x128xf32, #tpu.memory_space<vmem>>, vector<16x128xf32>
    %cst = arith.constant dense<0.000000e+00> : vector<16x128xf32>
    %2 = tpu.matmul %0, %1, %cst {dimension_numbers = #tpu.dot_dimension_numbers<[1], [0], [0], [1], [0, 0, 1, 1], [], []>, precision = #tpu.contract_precision<fp32>} : vector<16x16xf32>, vector<16x128xf32>, vector<16x128xf32> -> vector<16x128xf32>
    %c16 = arith.constant 16 : index
    %c0_3 = arith.constant 0 : index
    %3 = vector.load %arg1[%c16, %c0_3] : memref<88x128xf32, #tpu.memory_space<vmem>>, vector<16x128xf32>
    %4 = arith.addf %2, %3 : vector<16x128xf32>
    %cst_4 = arith.constant 0.000000e+00 : f32
    %5 = vector.broadcast %cst_4 : f32 to vector<16x128xf32>
    %6 = arith.maximumf %4, %5 : vector<16x128xf32>
    %c32 = arith.constant 32 : index
    %c0_5 = arith.constant 0 : index
    %7 = vector.load %arg1[%c32, %c0_5] : memref<88x128xf32, #tpu.memory_space<vmem>>, vector<16x128xf32>
    %8 = arith.mulf %6, %7 : vector<16x128xf32>
    %cst_6 = arith.constant dense<0.000000e+00> : vector<128xf32>
    %9 = vector.multi_reduction <add>, %8, %cst_6 [0] : vector<16x128xf32> to vector<128xf32>
    %10 = vector.shape_cast %9 : vector<128xf32> to vector<1x128xf32>
    %c48 = arith.constant 48 : index
    %c0_7 = arith.constant 0 : index
    %11 = vector.load %arg1[%c48, %c0_7] : memref<88x128xf32, #tpu.memory_space<vmem>>, vector<16x128xf32>
    %12 = arith.mulf %6, %11 : vector<16x128xf32>
    %cst_8 = arith.constant dense<0.000000e+00> : vector<128xf32>
    %13 = vector.multi_reduction <add>, %12, %cst_8 [0] : vector<16x128xf32> to vector<128xf32>
    %14 = vector.shape_cast %13 : vector<128xf32> to vector<1x128xf32>
    %c64 = arith.constant 64 : index
    %c0_9 = arith.constant 0 : index
    %15 = vector.load %arg1[%c64, %c0_9] : memref<88x128xf32, #tpu.memory_space<vmem>>, vector<16x128xf32>
    %16 = arith.mulf %6, %15 : vector<16x128xf32>
    %cst_10 = arith.constant dense<0.000000e+00> : vector<128xf32>
    %17 = vector.multi_reduction <add>, %16, %cst_10 [0] : vector<16x128xf32> to vector<128xf32>
    %18 = vector.shape_cast %17 : vector<128xf32> to vector<1x128xf32>
    %19 = tpu.concatenate %10, %14, %18 in 0 : vector<1x128xf32>, vector<1x128xf32>, vector<1x128xf32> -> vector<3x128xf32>
    %c80 = arith.constant 80 : index
    %c0_11 = arith.constant 0 : index
    %20 = vector.load %arg1[%c80, %c0_11] : memref<88x128xf32, #tpu.memory_space<vmem>>, vector<2x128xf32>
    %cst_12 = arith.constant dense<0.000000e+00> : vector<2x3xf32>
    %21 = tpu.matmul %20, %19, %cst_12 {dimension_numbers = #tpu.dot_dimension_numbers<[1], [1], [0], [0], [0, 0, 1, 0], [], []>, precision = #tpu.contract_precision<fp32>} : vector<2x128xf32>, vector<3x128xf32>, vector<2x3xf32> -> vector<2x3xf32>
    %c82 = arith.constant 82 : index
    %c0_13 = arith.constant 0 : index
    %22 = vector.load %arg1[%c82, %c0_13] : memref<88x128xf32, #tpu.memory_space<vmem>>, vector<1x3xf32>
    %23 = vector.broadcast %22 : vector<1x3xf32> to vector<2x3xf32>
    %24 = arith.addf %21, %23 : vector<2x3xf32>
    %cst_14 = arith.constant 0.000000e+00 : f32
    %25 = vector.broadcast %cst_14 : f32 to vector<8x128xf32>
    %c0_15 = arith.constant 0 : index
    %c0_16 = arith.constant 0 : index
    %26 = vector.load %arg2[%c0_15, %c0_16] : memref<8x128xf32, #tpu.memory_space<vmem>>, vector<8x128xf32>
    tpu.vector_store %arg2[%c0_15, %c0_16], %25 {strides = array<i32>} : memref<8x128xf32, #tpu.memory_space<vmem>>, vector<8x128xf32>,
    %c0_17 = arith.constant 0 : index
    %c0_18 = arith.constant 0 : index
    %27 = vector.load %arg2[%c0_17, %c0_18] : memref<8x128xf32, #tpu.memory_space<vmem>>, vector<2x3xf32>
    tpu.vector_store %arg2[%c0_17, %c0_18], %24 {strides = array<i32>} : memref<8x128xf32, #tpu.memory_space<vmem>>, vector<2x3xf32>,
    return
  }
}

</mosaic_0001>

<llo_original>
// kernel: squeeze.10
$region0: #{squeeze.10}
  %s0 = inlined_call_operand.vmem [shape: f32[2,8,8], index: 0, kind: input, shape index: {}]
  %s1 = inlined_call_operand.vmem [shape: f32[1,128], index: 1, kind: output, shape index: {}]
  $region1: #{squeeze.10} parent=0
    #allocation0 [shape = 'u8[4096]{0}', space=vmem, size = 0x1000, scoped, tag = 'scoped mem for output reshape']
    %v2 = vld [vmem:[%s0] sm:$0x1]
    %vm3 = vcmask 64512
    %4 = vst.msk [vmem:[#allocation0] sm:$0x1] %vm3, %v2
    %s5 = scalar_lea.vmem %s0, 15
    %v6 = vld [vmem:[%s5] sm:$0x1]
    %7 = vrot.lane.b32.xlu0 %v6, 120
    %v8 = vpop.permute.xlu0 %7
    %vm9 = vcmask 1048512
    %10 = vst.msk [vmem:[#allocation0] sm:$0x1] %vm9, %v8
    %s11 = scalar_lea.vmem %s0, 14
    %v12 = vld [vmem:[%s11] sm:$0x1]
    %13 = vrot.lane.b32.xlu0 %v12, 112
    %v14 = vpop.permute.xlu0 %13
    %vm15 = vcmask 982912
    %16 = vst.msk [vmem:[#allocation0] sm:$0x1] %vm15, %v14
    %s17 = scalar_lea.vmem %s0, 13
    %v18 = vld [vmem:[%s17] sm:$0x1]
    %19 = vrot.lane.b32.xlu0 %v18, 104
    %v20 = vpop.permute.xlu0 %19
    %vm21 = vcmask 917312
    %22 = vst.msk [vmem:[#allocation0] sm:$0x1] %vm21, %v20
    %s23 = scalar_lea.vmem %s0, 12
    %v24 = vld [vmem:[%s23] sm:$0x1]
    %25 = vrot.lane.b32.xlu0 %v24, 96
    %v26 = vpop.permute.xlu0 %25
    %vm27 = vcmask 851712
    %28 = vst.msk [vmem:[#allocation0] sm:$0x1] %vm27, %v26
    %s29 = scalar_lea.vmem %s0, 11
    %v30 = vld [vmem:[%s29] sm:$0x1]
    %31 = vrot.lane.b32.xlu0 %v30, 88
    %v32 = vpop.permute.xlu0 %31
    %vm33 = vcmask 786112
    %34 = vst.msk [vmem:[#allocation0] sm:$0x1] %vm33, %v32
    %s35 = scalar_lea.vmem %s0, 10
    %v36 = vld [vmem:[%s35] sm:$0x1]
    %37 = vrot.lane.b32.xlu0 %v36, 80
    %v38 = vpop.permute.xlu0 %37
    %vm39 = vcmask 720512
    %40 = vst.msk [vmem:[#allocation0] sm:$0x1] %vm39, %v38
    %s41 = scalar_lea.vmem %s0, 9
    %v42 = vld [vmem:[%s41] sm:$0x1]
    %43 = vrot.lane.b32.xlu0 %v42, 72
    %v44 = vpop.permute.xlu0 %43
    %vm45 = vcmask 654912
    %46 = vst.msk [vmem:[#allocation0] sm:$0x1] %vm45, %v44
    %s47 = scalar_lea.vmem %s0, 8
    %v48 = vld [vmem:[%s47] sm:$0x1]
    %49 = vrot.lane.b32.xlu0 %v48, 64
    %v50 = vpop.permute.xlu0 %49
    %vm51 = vcmask 589312
    %52 = vst.msk [vmem:[#allocation0] sm:$0x1] %vm51, %v50
    %s53 = scalar_lea.vmem %s0, 7
    %v54 = vld [vmem:[%s53] sm:$0x1]
    %55 = vrot.lane.b32.xlu0 %v54, 56
    %v56 = vpop.permute.xlu0 %55
    %vm57 = vcmask 523712
    %58 = vst.msk [vmem:[#allocation0] sm:$0x1] %vm57, %v56
    %s59 = scalar_lea.vmem %s0, 6
    %v60 = vld [vmem:[%s59] sm:$0x1]
    %61 = vrot.lane.b32.xlu0 %v60, 48
    %v62 = vpop.permute.xlu0 %61
    %vm63 = vcmask 458112
    %64 = vst.msk [vmem:[#allocation0] sm:$0x1] %vm63, %v62
    %s65 = scalar_lea.vmem %s0, 5
    %v66 = vld [vmem:[%s65] sm:$0x1]
    %67 = vrot.lane.b32.xlu0 %v66, 40
    %v68 = vpop.permute.xlu0 %67
    %vm69 = vcmask 392512
    %70 = vst.msk [vmem:[#allocation0] sm:$0x1] %vm69, %v68
    %s71 = scalar_lea.vmem %s0, 4
    %v72 = vld [vmem:[%s71] sm:$0x1]
    %73 = vrot.lane.b32.xlu0 %v72, 32
    %v74 = vpop.permute.xlu0 %73
    %vm75 = vcmask 326912
    %76 = vst.msk [vmem:[#allocation0] sm:$0x1] %vm75, %v74
    %s77 = scalar_lea.vmem %s0, 3
    %v78 = vld [vmem:[%s77] sm:$0x1]
    %79 = vrot.lane.b32.xlu0 %v78, 24
    %v80 = vpop.permute.xlu0 %79
    %vm81 = vcmask 261312
    %82 = vst.msk [vmem:[#allocation0] sm:$0x1] %vm81, %v80
    %s83 = scalar_lea.vmem %s0, 2
    %v84 = vld [vmem:[%s83] sm:$0x1]
    %85 = vrot.lane.b32.xlu0 %v84, 16
    %v86 = vpop.permute.xlu0 %85
    %vm87 = vcmask 195712
    %88 = vst.msk [vmem:[#allocation0] sm:$0x1] %vm87, %v86
    %s89 = scalar_lea.vmem %s0, 1
    %v90 = vld [vmem:[%s89] sm:$0x1]
    %91 = vrot.lane.b32.xlu0 %v90, 8
    %v92 = vpop.permute.xlu0 %91
    %vm93 = vcmask 130112
    %94 = vst.msk [vmem:[#allocation0] sm:$0x1] %vm93, %v92
    %s96 = sshllo.u32 0, 1
    %v98 = vld [vmem:[#allocation0] sm:%s96]
    %s99 = sshllo.u32 0, 1
    %100 = vst [vmem:[%s1] sm:%s99] %v98

// kernel: tile.7
$region0: #{tile.7}
  %s0 = inlined_call_operand.vmem [shape: f32[3,1,16,2,64], index: 0, kind: input, shape index: {}]
  %s1 = inlined_call_operand.vmem [shape: f32[48,128], index: 1, kind: output, shape index: {}]
  $region1: #{tile.7} parent=0
    #allocation0 [shape = 'u8[196608]{0}', space=vmem, size = 0x30000, scoped, tag = 'scoped mem for input reshape']
    %s3 = sshllo.u32 0, 2
    %s4 = smul.addr 2, 47
    %s5 = scalar_lea.vmem %s0, %s4
    %v6 = vld [vmem:[%s5] sm:%s3]
    %s7 = scalar_lea.vmem [#allocation0], 376
    %8 = vst [vmem:[%s7] sm:%s3] %v6
    %s9 = smul.addr 2, 46
    %s10 = scalar_lea.vmem %s0, %s9
    %v11 = vld [vmem:[%s10] sm:%s3]
    %s12 = scalar_lea.vmem [#allocation0], 368
    %13 = vst [vmem:[%s12] sm:%s3] %v11
    %s14 = smul.addr 2, 45
    %s15 = scalar_lea.vmem %s0, %s14
    %v16 = vld [vmem:[%s15] sm:%s3]
    %s17 = scalar_lea.vmem [#allocation0], 360
    %18 = vst [vmem:[%s17] sm:%s3] %v16
    %s19 = smul.addr 2, 44
    %s20 = scalar_lea.vmem %s0, %s19
    %v21 = vld [vmem:[%s20] sm:%s3]
    %s22 = scalar_lea.vmem [#allocation0], 352
    %23 = vst [vmem:[%s22] sm:%s3] %v21
    %s24 = smul.addr 2, 43
    %s25 = scalar_lea.vmem %s0, %s24
    %v26 = vld [vmem:[%s25] sm:%s3]
    %s27 = scalar_lea.vmem [#allocation0], 344
    %28 = vst [vmem:[%s27] sm:%s3] %v26
    %s29 = smul.addr 2, 42
    %s30 = scalar_lea.vmem %s0, %s29
    %v31 = vld [vmem:[%s30] sm:%s3]
    %s32 = scalar_lea.vmem [#allocation0], 336
    %33 = vst [vmem:[%s32] sm:%s3] %v31
    %s34 = smul.addr 2, 41
    %s35 = scalar_lea.vmem %s0, %s34
    %v36 = vld [vmem:[%s35] sm:%s3]
    %s37 = scalar_lea.vmem [#allocation0], 328
    %38 = vst [vmem:[%s37] sm:%s3] %v36
    %s39 = smul.addr 2, 40
    %s40 = scalar_lea.vmem %s0, %s39
    %v41 = vld [vmem:[%s40] sm:%s3]
    %s42 = scalar_lea.vmem [#allocation0], 320
    %43 = vst [vmem:[%s42] sm:%s3] %v41
    %s44 = smul.addr 2, 39
    %s45 = scalar_lea.vmem %s0, %s44
    %v46 = vld [vmem:[%s45] sm:%s3]
    %s47 = scalar_lea.vmem [#allocation0], 312
    %48 = vst [vmem:[%s47] sm:%s3] %v46
    %s49 = smul.addr 2, 38
    %s50 = scalar_lea.vmem %s0, %s49
    %v51 = vld [vmem:[%s50] sm:%s3]
    %s52 = scalar_lea.vmem [#allocation0], 304
    %53 = vst [vmem:[%s52] sm:%s3] %v51
    %s54 = smul.addr 2, 37
    %s55 = scalar_lea.vmem %s0, %s54
    %v56 = vld [vmem:[%s55] sm:%s3]
    %s57 = scalar_lea.vmem [#allocation0], 296
    %58 = vst [vmem:[%s57] sm:%s3] %v56
    %s59 = smul.addr 2, 36
    %s60 = scalar_lea.vmem %s0, %s59
    %v61 = vld [vmem:[%s60] sm:%s3]
    %s62 = scalar_lea.vmem [#allocation0], 288
    %63 = vst [vmem:[%s62] sm:%s3] %v61
    %s64 = smul.addr 2, 35
    %s65 = scalar_lea.vmem %s0, %s64
    %v66 = vld [vmem:[%s65] sm:%s3]
    %s67 = scalar_lea.vmem [#allocation0], 280
    %68 = vst [vmem:[%s67] sm:%s3] %v66
    %s69 = smul.addr 2, 34
    %s70 = scalar_lea.vmem %s0, %s69
    %v71 = vld [vmem:[%s70] sm:%s3]
    %s72 = scalar_lea.vmem [#allocation0], 272
    %73 = vst [vmem:[%s72] sm:%s3] %v71
    %s74 = smul.addr 2, 33
    %s75 = scalar_lea.vmem %s0, %s74
    %v76 = vld [vmem:[%s75] sm:%s3]
    %s77 = scalar_lea.vmem [#allocation0], 264
    %78 = vst [vmem:[%s77] sm:%s3] %v76
    %s79 = smul.addr 2, 32
    %s80 = scalar_lea.vmem %s0, %s79
    %v81 = vld [vmem:[%s80] sm:%s3]
    %s82 = scalar_lea.vmem [#allocation0], 256
    %83 = vst [vmem:[%s82] sm:%s3] %v81
    %s84 = smul.addr 2, 31
    %s85 = scalar_lea.vmem %s0, %s84
    %v86 = vld [vmem:[%s85] sm:%s3]
    %s87 = scalar_lea.vmem [#allocation0], 248
    %88 = vst [vmem:[%s87] sm:%s3] %v86
    %s89 = smul.addr 2, 30
    %s90 = scalar_lea.vmem %s0, %s89
    %v91 = vld [vmem:[%s90] sm:%s3]
    %s92 = scalar_lea.vmem [#allocation0], 240
    %93 = vst [vmem:[%s92] sm:%s3] %v91
    %s94 = smul.addr 2, 29
    %s95 = scalar_lea.vmem %s0, %s94
    %v96 = vld [vmem:[%s95] sm:%s3]
    %s97 = scalar_lea.vmem [#allocation0], 232
    %98 = vst [vmem:[%s97] sm:%s3] %v96
    %s99 = smul.addr 2, 28
    %s100 = scalar_lea.vmem %s0, %s99
    %v101 = vld [vmem:[%s100] sm:%s3]
    %s102 = scalar_lea.vmem [#allocation0], 224
    %103 = vst [vmem:[%s102] sm:%s3] %v101
    %s104 = smul.addr 2, 27
    %s105 = scalar_lea.vmem %s0, %s104
    %v106 = vld [vmem:[%s105] sm:%s3]
    %s107 = scalar_lea.vmem [#allocation0], 216
    %108 = vst [vmem:[%s107] sm:%s3] %v106
    %s109 = smul.addr 2, 26
    %s110 = scalar_lea.vmem %s0, %s109
    %v111 = vld [vmem:[%s110] sm:%s3]
    %s112 = scalar_lea.vmem [#allocation0], 208
    %113 = vst [vmem:[%s112] sm:%s3] %v111
    %s114 = smul.addr 2, 25
    %s115 = scalar_lea.vmem %s0, %s114
    %v116 = vld [vmem:[%s115] sm:%s3]
    %s117 = scalar_lea.vmem [#allocation0], 200
    %118 = vst [vmem:[%s117] sm:%s3] %v116
    %s119 = smul.addr 2, 24
    %s120 = scalar_lea.vmem %s0, %s119
    %v121 = vld [vmem:[%s120] sm:%s3]
    %s122 = scalar_lea.vmem [#allocation0], 192
    %123 = vst [vmem:[%s122] sm:%s3] %v121
    %s124 = smul.addr 2, 23
    %s125 = scalar_lea.vmem %s0, %s124
    %v126 = vld [vmem:[%s125] sm:%s3]
    %s127 = scalar_lea.vmem [#allocation0], 184
    %128 = vst [vmem:[%s127] sm:%s3] %v126
    %s129 = smul.addr 2, 22
    %s130 = scalar_lea.vmem %s0, %s129
    %v131 = vld [vmem:[%s130] sm:%s3]
    %s132 = scalar_lea.vmem [#allocation0], 176
    %133 = vst [vmem:[%s132] sm:%s3] %v131
    %s134 = smul.addr 2, 21
    %s135 = scalar_lea.vmem %s0, %s134
    %v136 = vld [vmem:[%s135] sm:%s3]
    %s137 = scalar_lea.vmem [#allocation0], 168
    %138 = vst [vmem:[%s137] sm:%s3] %v136
    %s139 = smul.addr 2, 20
    %s140 = scalar_lea.vmem %s0, %s139
    %v141 = vld [vmem:[%s140] sm:%s3]
    %s142 = scalar_lea.vmem [#allocation0], 160
    %143 = vst [vmem:[%s142] sm:%s3] %v141
    %s144 = smul.addr 2, 19
    %s145 = scalar_lea.vmem %s0, %s144
    %v146 = vld [vmem:[%s145] sm:%s3]
    %s147 = scalar_lea.vmem [#allocation0], 152
    %148 = vst [vmem:[%s147] sm:%s3] %v146
    %s149 = smul.addr 2, 18
    %s150 = scalar_lea.vmem %s0, %s149
    %v151 = vld [vmem:[%s150] sm:%s3]
    %s152 = scalar_lea.vmem [#allocation0], 144
    %153 = vst [vmem:[%s152] sm:%s3] %v151
    %s154 = smul.addr 2, 17
    %s155 = scalar_lea.vmem %s0, %s154
    %v156 = vld [vmem:[%s155] sm:%s3]
    %s157 = scalar_lea.vmem [#allocation0], 136
    %158 = vst [vmem:[%s157] sm:%s3] %v156
    %s159 = smul.addr 2, 16
    %s160 = scalar_lea.vmem %s0, %s159
    %v161 = vld [vmem:[%s160] sm:%s3]
    %s162 = scalar_lea.vmem [#allocation0], 128
    %163 = vst [vmem:[%s162] sm:%s3] %v161
    %s164 = smul.addr 2, 15
    %s165 = scalar_lea.vmem %s0, %s164
    %v166 = vld [vmem:[%s165] sm:%s3]
    %s167 = scalar_lea.vmem [#allocation0], 120
    %168 = vst [vmem:[%s167] sm:%s3] %v166
    %s169 = smul.addr 2, 14
    %s170 = scalar_lea.vmem %s0, %s169
    %v171 = vld [vmem:[%s170] sm:%s3]
    %s172 = scalar_lea.vmem [#allocation0], 112
    %173 = vst [vmem:[%s172] sm:%s3] %v171
    %s174 = smul.addr 2, 13
    %s175 = scalar_lea.vmem %s0, %s174
    %v176 = vld [vmem:[%s175] sm:%s3]
    %s177 = scalar_lea.vmem [#allocation0], 104
    %178 = vst [vmem:[%s177] sm:%s3] %v176
    %s179 = smul.addr 2, 12
    %s180 = scalar_lea.vmem %s0, %s179
    %v181 = vld [vmem:[%s180] sm:%s3]
    %s182 = scalar_lea.vmem [#allocation0], 96
    %183 = vst [vmem:[%s182] sm:%s3] %v181
    %s184 = smul.addr 2, 11
    %s185 = scalar_lea.vmem %s0, %s184
    %v186 = vld [vmem:[%s185] sm:%s3]
    %s187 = scalar_lea.vmem [#allocation0], 88
    %188 = vst [vmem:[%s187] sm:%s3] %v186
    %s189 = smul.addr 2, 10
    %s190 = scalar_lea.vmem %s0, %s189
    %v191 = vld [vmem:[%s190] sm:%s3]
    %s192 = scalar_lea.vmem [#allocation0], 80
    %193 = vst [vmem:[%s192] sm:%s3] %v191
    %s194 = smul.addr 2, 9
    %s195 = scalar_lea.vmem %s0, %s194
    %v196 = vld [vmem:[%s195] sm:%s3]
    %s197 = scalar_lea.vmem [#allocation0], 72
    %198 = vst [vmem:[%s197] sm:%s3] %v196
    %s199 = smul.addr 2, 8
    %s200 = scalar_lea.vmem %s0, %s199
    %v201 = vld [vmem:[%s200] sm:%s3]
    %s202 = scalar_lea.vmem [#allocation0], 64
    %203 = vst [vmem:[%s202] sm:%s3] %v201
    %s204 = smul.addr 2, 7
    %s205 = scalar_lea.vmem %s0, %s204
    %v206 = vld [vmem:[%s205] sm:%s3]
    %s207 = scalar_lea.vmem [#allocation0], 56
    %208 = vst [vmem:[%s207] sm:%s3] %v206
    %s209 = smul.addr 2, 6
    %s210 = scalar_lea.vmem %s0, %s209
    %v211 = vld [vmem:[%s210] sm:%s3]
    %s212 = scalar_lea.vmem [#allocation0], 48
    %213 = vst [vmem:[%s212] sm:%s3] %v211
    %s214 = smul.addr 2, 5
    %s215 = scalar_lea.vmem %s0, %s214
    %v216 = vld [vmem:[%s215] sm:%s3]
    %s217 = scalar_lea.vmem [#allocation0], 40
    %218 = vst [vmem:[%s217] sm:%s3] %v216
    %s219 = smul.addr 2, 4
    %s220 = scalar_lea.vmem %s0, %s219
    %v221 = vld [vmem:[%s220] sm:%s3]
    %s222 = scalar_lea.vmem [#allocation0], 32
    %223 = vst [vmem:[%s222] sm:%s3] %v221
    %s224 = smul.addr 2, 3
    %s225 = scalar_lea.vmem %s0, %s224
    %v226 = vld [vmem:[%s225] sm:%s3]
    %s227 = scalar_lea.vmem [#allocation0], 24
    %228 = vst [vmem:[%s227] sm:%s3] %v226
    %s229 = smul.addr 2, 2
    %s230 = scalar_lea.vmem %s0, %s229
    %v231 = vld [vmem:[%s230] sm:%s3]
    %s232 = scalar_lea.vmem [#allocation0], 16
    %233 = vst [vmem:[%s232] sm:%s3] %v231
    %s234 = scalar_lea.vmem %s0, 2
    %v235 = vld [vmem:[%s234] sm:%s3]
    %s236 = scalar_lea.vmem [#allocation0], 8
    %237 = vst [vmem:[%s236] sm:%s3] %v235
    %v238 = vld [vmem:[%s0] sm:%s3]
    %239 = vst [vmem:[#allocation0] sm:%s3] %v238
    %v240 = vld [vmem:[#allocation0] ss:$8 sm:$0xf]
    %v241 = vld [vmem:[#allocation0] ss:$8 sm:$0xf0]
    %vm242 = vcmask 1047556
    %v243 = vsel %vm242, %v241, %v240
    %vm244 = vcmask 523264
    %245 = vst.msk [vmem:[%s1] sm:$0xff] %vm244, %v243
    %s246 = scalar_lea.vmem [#allocation0], 64
    %v247 = vld [vmem:[%s246] ss:$8 sm:$0xf]
    %s248 = scalar_lea.vmem [#allocation0], 64
    %v249 = vld [vmem:[%s248] ss:$8 sm:$0xf0]
    %vm250 = vcmask 1047556
    %v251 = vsel %vm250, %v249, %v247
    %vm252 = vcmask 523264
    %s253 = scalar_lea.vmem %s1, 8
    %254 = vst.msk [vmem:[%s253] sm:$0xff] %vm252, %v251
    %s255 = scalar_lea.vmem [#allocation0], 128
    %v256 = vld [vmem:[%s255] ss:$8 sm:$0xf]
    %s257 = scalar_lea.vmem [#allocation0], 128
    %v258 = vld [vmem:[%s257] ss:$8 sm:$0xf0]
    %vm259 = vcmask 1047556
    %v260 = vsel %vm259, %v258, %v256
    %vm261 = vcmask 523264
    %s262 = scalar_lea.vmem %s1, 16
    %263 = vst.msk [vmem:[%s262] sm:$0xff] %vm261, %v260
    %s264 = scalar_lea.vmem [#allocation0], 192
    %v265 = vld [vmem:[%s264] ss:$8 sm:$0xf]
    %s266 = scalar_lea.vmem [#allocation0], 192
    %v267 = vld [vmem:[%s266] ss:$8 sm:$0xf0]
    %vm268 = vcmask 1047556
    %v269 = vsel %vm268, %v267, %v265
    %vm270 = vcmask 523264
    %s271 = scalar_lea.vmem %s1, 24
    %272 = vst.msk [vmem:[%s271] sm:$0xff] %vm270, %v269
    %s273 = scalar_lea.vmem [#allocation0], 256
    %v274 = vld [vmem:[%s273] ss:$8 sm:$0xf]
    %s275 = scalar_lea.vmem [#allocation0], 256
    %v276 = vld [vmem:[%s275] ss:$8 sm:$0xf0]
    %vm277 = vcmask 1047556
    %v278 = vsel %vm277, %v276, %v274
    %vm279 = vcmask 523264
    %s280 = scalar_lea.vmem %s1, 32
    %281 = vst.msk [vmem:[%s280] sm:$0xff] %vm279, %v278
    %s282 = scalar_lea.vmem [#allocation0], 320
    %v283 = vld [vmem:[%s282] ss:$8 sm:$0xf]
    %s284 = scalar_lea.vmem [#allocation0], 320
    %v285 = vld [vmem:[%s284] ss:$8 sm:$0xf0]
    %vm286 = vcmask 1047556
    %v287 = vsel %vm286, %v285, %v283
    %vm288 = vcmask 523264
    %s289 = scalar_lea.vmem %s1, 40
    %290 = vst.msk [vmem:[%s289] sm:$0xff] %vm288, %v287
    %s291 = scalar_lea.vmem [#allocation0], 1
    %v292 = vld [vmem:[%s291] ss:$8 sm:$0xf]
    %s293 = scalar_lea.vmem [#allocation0], 1
    %v294 = vld [vmem:[%s293] ss:$8 sm:$0xf0]
    %vm295 = vcmask 1047556
    %v296 = vsel %vm295, %v294, %v292
    %297 = vrot.lane.b32.xlu0 %v296, 64
    %v298 = vpop.permute.xlu0 %297
    %vm299 = vcmask 1048064
    %300 = vst.msk [vmem:[%s1] sm:$0xff] %vm299, %v298
    %s301 = scalar_lea.vmem [#allocation0], 257
    %v302 = vld [vmem:[%s301] ss:$8 sm:$0xf]
    %s303 = scalar_lea.vmem [#allocation0], 257
    %v304 = vld [vmem:[%s303] ss:$8 sm:$0xf0]
    %vm305 = vcmask 1047556
    %v306 = vsel %vm305, %v304, %v302
    %307 = vrot.lane.b32.xlu0 %v306, 64
    %v308 = vpop.permute.xlu0 %307
    %vm309 = vcmask 1048064
    %s310 = scalar_lea.vmem %s1, 32
    %311 = vst.msk [vmem:[%s310] sm:$0xff] %vm309, %v308
    %s312 = scalar_lea.vmem [#allocation0], 65
    %v313 = vld [vmem:[%s312] ss:$8 sm:$0xf]
    %s314 = scalar_lea.vmem [#allocation0], 65
    %v315 = vld [vmem:[%s314] ss:$8 sm:$0xf0]
    %vm316 = vcmask 1047556
    %v317 = vsel %vm316, %v315, %v313
    %318 = vrot.lane.b32.xlu0 %v317, 64
    %v319 = vpop.permute.xlu0 %318
    %vm320 = vcmask 1048064
    %s321 = scalar_lea.vmem %s1, 8
    %322 = vst.msk [vmem:[%s321] sm:$0xff] %vm320, %v319
    %s323 = scalar_lea.vmem [#allocation0], 321
    %v324 = vld [vmem:[%s323] ss:$8 sm:$0xf]
    %s325 = scalar_lea.vmem [#allocation0], 321
    %v326 = vld [vmem:[%s325] ss:$8 sm:$0xf0]
    %vm327 = vcmask 1047556
    %v328 = vsel %vm327, %v326, %v324
    %329 = vrot.lane.b32.xlu0 %v328, 64
    %v330 = vpop.permute.xlu0 %329
    %vm331 = vcmask 1048064
    %s332 = scalar_lea.vmem %s1, 40
    %333 = vst.msk [vmem:[%s332] sm:$0xff] %vm331, %v330
    %s334 = scalar_lea.vmem [#allocation0], 129
    %v335 = vld [vmem:[%s334] ss:$8 sm:$0xf]
    %s336 = scalar_lea.vmem [#allocation0], 129
    %v337 = vld [vmem:[%s336] ss:$8 sm:$0xf0]
    %vm338 = vcmask 1047556
    %v339 = vsel %vm338, %v337, %v335
    %340 = vrot.lane.b32.xlu0 %v339, 64
    %v341 = vpop.permute.xlu0 %340
    %vm342 = vcmask 1048064
    %s343 = scalar_lea.vmem %s1, 16
    %344 = vst.msk [vmem:[%s343] sm:$0xff] %vm342, %v341
    %s345 = scalar_lea.vmem [#allocation0], 193
    %v346 = vld [vmem:[%s345] ss:$8 sm:$0xf]
    %s347 = scalar_lea.vmem [#allocation0], 193
    %v348 = vld [vmem:[%s347] ss:$8 sm:$0xf0]
    %vm349 = vcmask 1047556
    %v350 = vsel %vm349, %v348, %v346
    %351 = vrot.lane.b32.xlu0 %v350, 64
    %v352 = vpop.permute.xlu0 %351
    %vm353 = vcmask 1048064
    %s354 = scalar_lea.vmem %s1, 24
    %355 = vst.msk [vmem:[%s354] sm:$0xff] %vm353, %v352

// kernel: audio_cnn_forward.2
$region0: #{audio_cnn_forward.2}
  #allocation0 [shape = 'u32[]', space=smem, size = 0x4, offset = 0x4, fixed_abs, tag = 'smem constant byte address 0x4 - core index']
  #allocation1 [shape = 'u32[144,128]{1,0:T(1,128)}', space=vmem, size = 0x12000, scoped, tag = 'internal scratch']
  #allocation2 [shape = 'u32[2048]{0}', space=vmem, size = 0x2000, scoped, tag = 'scoped memory for audio_cnn_forward.2']
  #allocation3 [shape = 'u32[2048]{0}', space=vmem, size = 0x2000, scoped, tag = 'scoped memory for audio_cnn_forward.2']
  #allocation4 [shape = 'u32[2048]{0}', space=vmem, size = 0x2000, scoped, tag = 'scoped memory for audio_cnn_forward.2']
  #allocation5 [shape = 'u32[2048]{0}', space=vmem, size = 0x2000, scoped, tag = 'scoped memory for audio_cnn_forward.2']
  #allocation6 [shape = 'u32[2048]{0}', space=vmem, size = 0x2000, scoped, tag = 'scoped memory for audio_cnn_forward.2']
  #allocation7 [shape = 'u32[2048]{0}', space=vmem, size = 0x2000, scoped, tag = 'scoped memory for audio_cnn_forward.2']
  #allocation8 [shape = 'u32[2048]{0}', space=vmem, size = 0x2000, scoped, tag = 'scoped memory for audio_cnn_forward.2']
  #allocation9 [shape = 'u32[2048]{0}', space=vmem, size = 0x2000, scoped, tag = 'scoped memory for audio_cnn_forward.2']
  #allocation10 [shape = 'u32[2048]{0}', space=vmem, size = 0x2000, scoped, tag = 'scoped memory for audio_cnn_forward.2']
  #allocation11 [shape = 'u32[2048]{0}', space=vmem, size = 0x2000, scoped, tag = 'scoped memory for audio_cnn_forward.2']
  %s0 = inlined_call_operand.vmem [shape: f32[83,128], index: 0, kind: input, shape index: {}]
  %s1 = inlined_call_operand.<no memory space> [shape: f32[], index: 1, kind: input, shape index: {}]
  %s2 = inlined_call_operand.vmem [shape: f32[9,128], index: 2, kind: input, shape index: {}]
  %s3 = inlined_call_operand.vmem [shape: f32[8,128], index: 3, kind: output, shape index: {}]
  %s4 = sld [smem:[#allocation0]]
  $region18: #{audio_cnn_forward.2} parent=0
    _
  %s6 = ssub.s32 1, %s4
  %s7 = scalar_select 0, %s6, %s4
  %v8 = vstv %s1
  %v9 = vstv %s1
  $region1: #{audio_cnn_forward.2} parent=0
    #allocation12 [shape = 'u8[8192]{0}', space=vmem, size = 0x2000, dematerialized = true, scoped, tag = 'FusionAdapter Buffer %fusion.2 = f32[16,128]{1,0:T(8,128)} fusion(%param_2.1, %param_1.3), kind=kLoop, calls=%fused_computation.2.clone, metadata={op_name="jit(audio_cnn_forward)/jit(_pad)/pad" stack_frame_id=11}']
    #allocation13 [shape = 'u8[45056]{0}', space=vmem, size = 0xb000, dematerialized = true, scoped, tag = 'FusionAdapter Buffer %fusion.1 = f32[88,128]{1,0:T(8,128)} fusion(%param_0.2, %param_1.3), kind=kLoop, calls=%fused_computation.1.clone, metadata={op_name="jit(audio_cnn_forward)/jit(_pad)/pad" stack_frame_id=24}']
    // Predicated region
    $region2: #{audio_cnn_forward.2} parent=1 // pred_check
      _
    $region3: #{audio_cnn_forward.2} parent=1 // pred_check_branch
      %11 = sbr.rel (0) target = $region5
    $region4: #{audio_cnn_forward.2} parent=1 // pred_region
      _
    $region5: #{audio_cnn_forward.2} parent=1 // pred_fallthru
      _
    // Predicated region
    $region6: #{audio_cnn_forward.2} parent=1 // pred_check
      _
    $region7: #{audio_cnn_forward.2} parent=1 // pred_check_branch
      %13 = sbr.rel (0) target = $region9
    $region8: #{audio_cnn_forward.2} parent=1 // pred_region
      _
    $region9: #{audio_cnn_forward.2} parent=1 // pred_fallthru
      _
    %v14 = vld [vmem:[%s2] sm:$0xff]
    %v15 = vlaneseq
    %v16 = vshrl.u32 %v15, 7
    %vm18 = vcmp.lt.s32.totalorder %v16, 9
    %v19 = vsel %vm18, %v14, %v8
    %21 = vst [vmem:[#allocation12] sm:$0xff] %v19
    %s22 = scalar_lea.vmem %s2, 8
    %v23 = vld [vmem:[%s22] sm:$0xff]
    %v24 = vlaneseq
    %v25 = vshrl.u32 %v24, 7
    %v26 = vadd.s32 %v25, 8
    %vm27 = vcmp.lt.s32.totalorder %v26, 9
    %v28 = vsel %vm27, %v23, %v8
    %s29 = scalar_lea.vmem [#allocation12], 8
    %31 = vst [vmem:[%s29] sm:$0xff] %v28
    %v32 = vld [vmem:[%s0] sm:$0xff]
    %v33 = vlaneseq
    %v34 = vshrl.u32 %v33, 7
    %vm36 = vcmp.lt.s32.totalorder %v34, 83
    %v37 = vsel %vm36, %v32, %v9
    %39 = vst [vmem:[#allocation13] sm:$0xff] %v37
    %s40 = scalar_lea.vmem %s0, 8
    %v41 = vld [vmem:[%s40] sm:$0xff]
    %v42 = vlaneseq
    %v43 = vshrl.u32 %v42, 7
    %v44 = vadd.s32 %v43, 8
    %vm45 = vcmp.lt.s32.totalorder %v44, 83
    %v46 = vsel %vm45, %v41, %v9
    %s47 = scalar_lea.vmem [#allocation13], 8
    %49 = vst [vmem:[%s47] sm:$0xff] %v46
    %s50 = scalar_lea.vmem %s0, 16
    %v51 = vld [vmem:[%s50] sm:$0xff]
    %v52 = vlaneseq
    %v53 = vshrl.u32 %v52, 7
    %v54 = vadd.s32 %v53, 16
    %vm55 = vcmp.lt.s32.totalorder %v54, 83
    %v56 = vsel %vm55, %v51, %v9
    %s57 = scalar_lea.vmem [#allocation13], 16
    %59 = vst [vmem:[%s57] sm:$0xff] %v56
    %s60 = scalar_lea.vmem %s0, 24
    %v61 = vld [vmem:[%s60] sm:$0xff]
    %v62 = vlaneseq
    %v63 = vshrl.u32 %v62, 7
    %v64 = vadd.s32 %v63, 24
    %vm65 = vcmp.lt.s32.totalorder %v64, 83
    %v66 = vsel %vm65, %v61, %v9
    %s67 = scalar_lea.vmem [#allocation13], 24
    %69 = vst [vmem:[%s67] sm:$0xff] %v66
    %s70 = scalar_lea.vmem %s0, 32
    %v71 = vld [vmem:[%s70] sm:$0xff]
    %v72 = vlaneseq
    %v73 = vshrl.u32 %v72, 7
    %v74 = vadd.s32 %v73, 32
    %vm75 = vcmp.lt.s32.totalorder %v74, 83
    %v76 = vsel %vm75, %v71, %v9
    %s77 = scalar_lea.vmem [#allocation13], 32
    %79 = vst [vmem:[%s77] sm:$0xff] %v76
    %s80 = scalar_lea.vmem %s0, 40
    %v81 = vld [vmem:[%s80] sm:$0xff]
    %v82 = vlaneseq
    %v83 = vshrl.u32 %v82, 7
    %v84 = vadd.s32 %v83, 40
    %vm85 = vcmp.lt.s32.totalorder %v84, 83
    %v86 = vsel %vm85, %v81, %v9
    %s87 = scalar_lea.vmem [#allocation13], 40
    %89 = vst [vmem:[%s87] sm:$0xff] %v86
    %s90 = scalar_lea.vmem %s0, 48
    %v91 = vld [vmem:[%s90] sm:$0xff]
    %v92 = vlaneseq
    %v93 = vshrl.u32 %v92, 7
    %v94 = vadd.s32 %v93, 48
    %vm95 = vcmp.lt.s32.totalorder %v94, 83
    %v96 = vsel %vm95, %v91, %v9
    %s97 = scalar_lea.vmem [#allocation13], 48
    %99 = vst [vmem:[%s97] sm:$0xff] %v96
    %s100 = scalar_lea.vmem %s0, 56
    %v101 = vld [vmem:[%s100] sm:$0xff]
    %v102 = vlaneseq
    %v103 = vshrl.u32 %v102, 7
    %v104 = vadd.s32 %v103, 56
    %vm105 = vcmp.lt.s32.totalorder %v104, 83
    %v106 = vsel %vm105, %v101, %v9
    %s107 = scalar_lea.vmem [#allocation13], 56
    %109 = vst [vmem:[%s107] sm:$0xff] %v106
    %s110 = scalar_lea.vmem %s0, 64
    %v111 = vld [vmem:[%s110] sm:$0xff]
    %v112 = vlaneseq
    %v113 = vshrl.u32 %v112, 7
    %v114 = vadd.s32 %v113, 64
    %vm115 = vcmp.lt.s32.totalorder %v114, 83
    %v116 = vsel %vm115, %v111, %v9
    %s117 = scalar_lea.vmem [#allocation13], 64
    %119 = vst [vmem:[%s117] sm:$0xff] %v116
    %s120 = scalar_lea.vmem %s0, 72
    %v121 = vld [vmem:[%s120] sm:$0xff]
    %v122 = vlaneseq
    %v123 = vshrl.u32 %v122, 7
    %v124 = vadd.s32 %v123, 72
    %vm125 = vcmp.lt.s32.totalorder %v124, 83
    %v126 = vsel %vm125, %v121, %v9
    %s127 = scalar_lea.vmem [#allocation13], 72
    %129 = vst [vmem:[%s127] sm:$0xff] %v126
    %s130 = scalar_lea.vmem %s0, 80
    %v131 = vld [vmem:[%s130] sm:$0xff]
    %v132 = vlaneseq
    %v133 = vshrl.u32 %v132, 7
    %v134 = vadd.s32 %v133, 80
    %vm135 = vcmp.lt.s32.totalorder %v134, 83
    %v136 = vsel %vm135, %v131, %v9
    %s137 = scalar_lea.vmem [#allocation13], 80
    %139 = vst [vmem:[%s137] sm:$0xff] %v136
    %v140 = vld [vmem:[#allocation13] sm:$0xff]
    %v141 = vld [vmem:[#allocation13 + $0x8] sm:$0xff]
    %v142 = vld [vmem:[#allocation12] sm:$0xff]
    %v143 = vld [vmem:[#allocation12 + $0x8] sm:$0xff]
    %v144 = vld [vmem:[#allocation13 + $0x10] sm:$0xff]
    %v145 = vld [vmem:[#allocation13 + $0x18] sm:$0xff]
    %vm146 = vcmask 130048
    %v148 = vsel %vm146, %v140, 0
    %v151 = vsel %vm146, %v141, 0
    %153 = vmatprep.subr.mxu0 0.0
    %v154 = vand.u32 %v142, 4294901760
    %155 = vmatpush1.msra.mxu0 %v154
    %156 = vmatprep.subr.mxu0 0.0
    %v157 = vand.u32 %v143, 4294901760
    %158 = vmatpush1.msra.mxu0 %v157
    %159 = vmatprep.subr.mxu0 0.0
    %160 = vmatpush1.msra.mxu0 0.0
    %161 = vmatprep.subr.mxu0 0.0
    %162 = vmatpush1.msra.mxu0 0.0
    %163 = vmatprep.subr.mxu0 0.0
    %164 = vmatpush1.msra.mxu0 0.0
    %165 = vmatprep.subr.mxu0 0.0
    %166 = vmatpush1.msra.mxu0 0.0
    %167 = vmatprep.subr.mxu0 0.0
    %168 = vmatpush1.msra.mxu0 0.0
    %169 = vmatprep.subr.mxu0 0.0
    %170 = vmatpush1.msra.mxu0 0.0
    %171 = vmatprep.subr.mxu0 0.0
    %172 = vmatpush1.msra.mxu0 0.0
    %173 = vmatprep.subr.mxu0 0.0
    %174 = vmatpush1.msra.mxu0 0.0
    %175 = vmatprep.subr.mxu0 0.0
    %176 = vmatpush1.msra.mxu0 0.0
    %177 = vmatprep.subr.mxu0 0.0
    %178 = vmatpush1.msra.mxu0 0.0
    %179 = vmatprep.subr.mxu0 0.0
    %180 = vmatpush1.msra.mxu0 0.0
    %181 = vmatprep.subr.mxu0 0.0
    %182 = vmatpush1.msra.mxu0 0.0
    %183 = vmatprep.subr.mxu0 0.0
    %184 = vmatpush1.msra.mxu0 0.0
    %185 = vmatprep.subr.mxu0 0.0
    %186 = vmatpush1.msra.mxu0 0.0
    %187 = vmatprep.subr.mxu0 0.0
    %188 = vmatpush1.msra.mxu0 0.0
    %189 = vmatprep.subr.mxu0 0.0
    %190 = vmatpush1.msra.mxu0 0.0
    %191 = vmatprep.subr.mxu0 0.0
    %192 = vmatpush1.msra.mxu0 0.0
    %193 = vmatprep.subr.mxu0 0.0
    %194 = vmatpush1.msra.mxu0 0.0
    %195 = vmatprep.subr.mxu0 0.0
    %196 = vmatpush1.msra.mxu0 0.0
    %197 = vmatprep.subr.mxu0 0.0
    %198 = vmatpush1.msra.mxu0 0.0
    %199 = vmatprep.subr.mxu0 0.0
    %200 = vmatpush1.msra.mxu0 0.0
    %201 = vmatprep.subr.mxu0 0.0
    %202 = vmatpush1.msra.mxu0 0.0
    %203 = vmatprep.subr.mxu0 0.0
    %204 = vmatpush1.msra.mxu0 0.0
    %205 = vmatprep.subr.mxu0 0.0
    %206 = vmatpush1.msra.mxu0 0.0
    %207 = vmatprep.subr.mxu0 0.0
    %208 = vmatpush1.msra.mxu0 0.0
    %209 = vmatprep.subr.mxu0 0.0
    %210 = vmatpush1.msra.mxu0 0.0
    %211 = vmatprep.subr.mxu0 0.0
    %212 = vmatpush1.msra.mxu0 0.0
    %213 = vmatprep.subr.mxu0 0.0
    %214 = vmatpush1.msra.mxu0 0.0
    %215 = vmatprep.subr.mxu0 0.0
    %216 = vmatpush1.msra.mxu0 0.0
    %217 = vmatprep.subr.mxu0 0.0
    %218 = vmatpush1.msra.mxu0 0.0
    %219 = vmatprep.mubr.f32.mxu0 0.0
    %v220 = vand.u32 %v148, 4294901760
    %v221 = vsub.f32 %v148, %v220
    %v222 = vand.u32 %v221, 4294901760
    %v223 = vsub.f32 %v221, %v222
    %v224 = vand.u32 %v223, 4294901760
    %225 = vmatmul.mubr.f32.gmra.mrb[0].mxu0 %v224
    %v226 = vpop.f32.mrb[0].mxu0
    %v227 = vadd.f32 %v144, %v226
    %v228 = vpop.f32.mrb[0].mxu0
    %229 = vmatprep.mubr.f32.mxu0 0.0
    %v230 = vand.u32 %v151, 4294901760
    %v231 = vsub.f32 %v151, %v230
    %v232 = vand.u32 %v231, 4294901760
    %v233 = vsub.f32 %v231, %v232
    %v234 = vand.u32 %v233, 4294901760
    %235 = vmatmul.mubr.f32.gmra.mrb[0].mxu0 %v234
    %v236 = vpop.f32.mrb[0].mxu0
    %v237 = vadd.f32 %v145, %v236
    %v238 = vpop.f32.mrb[0].mxu0
    %239 = vdwg.mxu0
    %240 = vmatprep.subr.mxu0 0.0
    %v241 = vand.u32 %v142, 4294901760
    %v242 = vsub.f32 %v142, %v241
    %v243 = vand.u32 %v242, 4294901760
    %v244 = vsub.f32 %v242, %v243
    %v245 = vand.u32 %v244, 4294901760
    %246 = vmatpush1.msra.mxu0 %v245
    %247 = vmatprep.subr.mxu0 0.0
    %v248 = vand.u32 %v143, 4294901760
    %v249 = vsub.f32 %v143, %v248
    %v250 = vand.u32 %v249, 4294901760
    %v251 = vsub.f32 %v249, %v250
    %v252 = vand.u32 %v251, 4294901760
    %253 = vmatpush1.msra.mxu0 %v252
    %254 = vmatprep.subr.mxu0 0.0
    %255 = vmatpush1.msra.mxu0 0.0
    %256 = vmatprep.subr.mxu0 0.0
    %257 = vmatpush1.msra.mxu0 0.0
    %258 = vmatprep.subr.mxu0 0.0
    %259 = vmatpush1.msra.mxu0 0.0
    %260 = vmatprep.subr.mxu0 0.0
    %261 = vmatpush1.msra.mxu0 0.0
    %262 = vmatprep.subr.mxu0 0.0
    %263 = vmatpush1.msra.mxu0 0.0
    %264 = vmatprep.subr.mxu0 0.0
    %265 = vmatpush1.msra.mxu0 0.0
    %266 = vmatprep.subr.mxu0 0.0
    %267 = vmatpush1.msra.mxu0 0.0
    %268 = vmatprep.subr.mxu0 0.0
    %269 = vmatpush1.msra.mxu0 0.0
    %270 = vmatprep.subr.mxu0 0.0
    %271 = vmatpush1.msra.mxu0 0.0
    %272 = vmatprep.subr.mxu0 0.0
    %273 = vmatpush1.msra.mxu0 0.0
    %274 = vmatprep.subr.mxu0 0.0
    %275 = vmatpush1.msra.mxu0 0.0
    %276 = vmatprep.subr.mxu0 0.0
    %277 = vmatpush1.msra.mxu0 0.0
    %278 = vmatprep.subr.mxu0 0.0
    %279 = vmatpush1.msra.mxu0 0.0
    %280 = vmatprep.subr.mxu0 0.0
    %281 = vmatpush1.msra.mxu0 0.0
    %282 = vmatprep.subr.mxu0 0.0
    %283 = vmatpush1.msra.mxu0 0.0
    %284 = vmatprep.subr.mxu0 0.0
    %285 = vmatpush1.msra.mxu0 0.0
    %286 = vmatprep.subr.mxu0 0.0
    %287 = vmatpush1.msra.mxu0 0.0
    %288 = vmatprep.subr.mxu0 0.0
    %289 = vmatpush1.msra.mxu0 0.0
    %290 = vmatprep.subr.mxu0 0.0
    %291 = vmatpush1.msra.mxu0 0.0
    %292 = vmatprep.subr.mxu0 0.0
    %293 = vmatpush1.msra.mxu0 0.0
    %294 = vmatprep.subr.mxu0 0.0
    %295 = vmatpush1.msra.mxu0 0.0
    %296 = vmatprep.subr.mxu0 0.0
    %297 = vmatpush1.msra.mxu0 0.0
    %298 = vmatprep.subr.mxu0 0.0
    %299 = vmatpush1.msra.mxu0 0.0
    %300 = vmatprep.subr.mxu0 0.0
    %301 = vmatpush1.msra.mxu0 0.0
    %302 = vmatprep.subr.mxu0 0.0
    %303 = vmatpush1.msra.mxu0 0.0
    %304 = vmatprep.subr.mxu0 0.0
    %305 = vmatpush1.msra.mxu0 0.0
    %306 = vmatprep.subr.mxu0 0.0
    %307 = vmatpush1.msra.mxu0 0.0
    %308 = vmatprep.subr.mxu0 0.0
    %309 = vmatpush1.msra.mxu0 0.0
    %310 = vmatprep.subr.mxu0 0.0
    %311 = vmatpush1.msra.mxu0 0.0
    %312 = vmatprep.subr.mxu0 0.0
    %313 = vmatpush1.msra.mxu0 0.0
    %314 = vmatprep.mubr.f32.mxu0 0.0
    %v315 = vand.u32 %v148, 4294901760
    %316 = vmatmul.mubr.f32.gmra.mrb[0].mxu0 %v315
    %v317 = vpop.f32.mrb[0].mxu0
    %v318 = vadd.f32 %v227, %v317
    %v319 = vpop.f32.mrb[0].mxu0
    %320 = vmatprep.mubr.f32.mxu0 0.0
    %v321 = vand.u32 %v151, 4294901760
    %322 = vmatmul.mubr.f32.gmra.mrb[0].mxu0 %v321
    %v323 = vpop.f32.mrb[0].mxu0
    %v324 = vadd.f32 %v237, %v323
    %v325 = vpop.f32.mrb[0].mxu0
    %326 = vdwg.mxu0
    %327 = vmatprep.subr.mxu0 0.0
    %v328 = vand.u32 %v142, 4294901760
    %v329 = vsub.f32 %v142, %v328
    %330 = vmatpush1.msra.mxu0 %v329
    %331 = vmatprep.subr.mxu0 0.0
    %v332 = vand.u32 %v143, 4294901760
    %v333 = vsub.f32 %v143, %v332
    %334 = vmatpush1.msra.mxu0 %v333
    %335 = vmatprep.subr.mxu0 0.0
    %336 = vmatpush1.msra.mxu0 0.0
    %337 = vmatprep.subr.mxu0 0.0
    %338 = vmatpush1.msra.mxu0 0.0
    %339 = vmatprep.subr.mxu0 0.0
    %340 = vmatpush1.msra.mxu0 0.0
    %341 = vmatprep.subr.mxu0 0.0
    %342 = vmatpush1.msra.mxu0 0.0
    %343 = vmatprep.subr.mxu0 0.0
    %344 = vmatpush1.msra.mxu0 0.0
    %345 = vmatprep.subr.mxu0 0.0
    %346 = vmatpush1.msra.mxu0 0.0
    %347 = vmatprep.subr.mxu0 0.0
    %348 = vmatpush1.msra.mxu0 0.0
    %349 = vmatprep.subr.mxu0 0.0
    %350 = vmatpush1.msra.mxu0 0.0
    %351 = vmatprep.subr.mxu0 0.0
    %352 = vmatpush1.msra.mxu0 0.0
    %353 = vmatprep.subr.mxu0 0.0
    %354 = vmatpush1.msra.mxu0 0.0
    %355 = vmatprep.subr.mxu0 0.0
    %356 = vmatpush1.msra.mxu0 0.0
    %357 = vmatprep.subr.mxu0 0.0
    %358 = vmatpush1.msra.mxu0 0.0
    %359 = vmatprep.subr.mxu0 0.0
    %360 = vmatpush1.msra.mxu0 0.0
    %361 = vmatprep.subr.mxu0 0.0
    %362 = vmatpush1.msra.mxu0 0.0
    %363 = vmatprep.subr.mxu0 0.0
    %364 = vmatpush1.msra.mxu0 0.0
    %365 = vmatprep.subr.mxu0 0.0
    %366 = vmatpush1.msra.mxu0 0.0
    %367 = vmatprep.subr.mxu0 0.0
    %368 = vmatpush1.msra.mxu0 0.0
    %369 = vmatprep.subr.mxu0 0.0
    %370 = vmatpush1.msra.mxu0 0.0
    %371 = vmatprep.subr.mxu0 0.0
    %372 = vmatpush1.msra.mxu0 0.0
    %373 = vmatprep.subr.mxu0 0.0
    %374 = vmatpush1.msra.mxu0 0.0
    %375 = vmatprep.subr.mxu0 0.0
    %376 = vmatpush1.msra.mxu0 0.0
    %377 = vmatprep.subr.mxu0 0.0
    %378 = vmatpush1.msra.mxu0 0.0
    %379 = vmatprep.subr.mxu0 0.0
    %380 = vmatpush1.msra.mxu0 0.0
    %381 = vmatprep.subr.mxu0 0.0
    %382 = vmatpush1.msra.mxu0 0.0
    %383 = vmatprep.subr.mxu0 0.0
    %384 = vmatpush1.msra.mxu0 0.0
    %385 = vmatprep.subr.mxu0 0.0
    %386 = vmatpush1.msra.mxu0 0.0
    %387 = vmatprep.subr.mxu0 0.0
    %388 = vmatpush1.msra.mxu0 0.0
    %389 = vmatprep.subr.mxu0 0.0
    %390 = vmatpush1.msra.mxu0 0.0
    %391 = vmatprep.subr.mxu0 0.0
    %392 = vmatpush1.msra.mxu0 0.0
    %393 = vmatprep.subr.mxu0 0.0
    %394 = vmatpush1.msra.mxu0 0.0
    %395 = vmatprep.mubr.f32.mxu0 0.0
    %v396 = vand.u32 %v148, 4294901760
    %v397 = vsub.f32 %v148, %v396
    %398 = vmatmul.mubr.f32.gmra.mrb[0].mxu0 %v397
    %v399 = vpop.f32.mrb[0].mxu0
    %v400 = vadd.f32 %v318, %v399
    %v401 = vpop.f32.mrb[0].mxu0
    %402 = vmatprep.mubr.f32.mxu0 0.0
    %v403 = vand.u32 %v151, 4294901760
    %v404 = vsub.f32 %v151, %v403
    %405 = vmatmul.mubr.f32.gmra.mrb[0].mxu0 %v404
    %v406 = vpop.f32.mrb[0].mxu0
    %v407 = vadd.f32 %v324, %v406
    %v408 = vpop.f32.mrb[0].mxu0
    %409 = vdwg.mxu0
    %410 = vmatprep.subr.mxu0 0.0
    %v411 = vand.u32 %v142, 4294901760
    %412 = vmatpush1.msra.mxu0 %v411
    %413 = vmatprep.subr.mxu0 0.0
    %v414 = vand.u32 %v143, 4294901760
    %415 = vmatpush1.msra.mxu0 %v414
    %416 = vmatprep.subr.mxu0 0.0
    %417 = vmatpush1.msra.mxu0 0.0
    %418 = vmatprep.subr.mxu0 0.0
    %419 = vmatpush1.msra.mxu0 0.0
    %420 = vmatprep.subr.mxu0 0.0
    %421 = vmatpush1.msra.mxu0 0.0
    %422 = vmatprep.subr.mxu0 0.0
    %423 = vmatpush1.msra.mxu0 0.0
    %424 = vmatprep.subr.mxu0 0.0
    %425 = vmatpush1.msra.mxu0 0.0
    %426 = vmatprep.subr.mxu0 0.0
    %427 = vmatpush1.msra.mxu0 0.0
    %428 = vmatprep.subr.mxu0 0.0
    %429 = vmatpush1.msra.mxu0 0.0
    %430 = vmatprep.subr.mxu0 0.0
    %431 = vmatpush1.msra.mxu0 0.0
    %432 = vmatprep.subr.mxu0 0.0
    %433 = vmatpush1.msra.mxu0 0.0
    %434 = vmatprep.subr.mxu0 0.0
    %435 = vmatpush1.msra.mxu0 0.0
    %436 = vmatprep.subr.mxu0 0.0
    %437 = vmatpush1.msra.mxu0 0.0
    %438 = vmatprep.subr.mxu0 0.0
    %439 = vmatpush1.msra.mxu0 0.0
    %440 = vmatprep.subr.mxu0 0.0
    %441 = vmatpush1.msra.mxu0 0.0
    %442 = vmatprep.subr.mxu0 0.0
    %443 = vmatpush1.msra.mxu0 0.0
    %444 = vmatprep.subr.mxu0 0.0
    %445 = vmatpush1.msra.mxu0 0.0
    %446 = vmatprep.subr.mxu0 0.0
    %447 = vmatpush1.msra.mxu0 0.0
    %448 = vmatprep.subr.mxu0 0.0
    %449 = vmatpush1.msra.mxu0 0.0
    %450 = vmatprep.subr.mxu0 0.0
    %451 = vmatpush1.msra.mxu0 0.0
    %452 = vmatprep.subr.mxu0 0.0
    %453 = vmatpush1.msra.mxu0 0.0
    %454 = vmatprep.subr.mxu0 0.0
    %455 = vmatpush1.msra.mxu0 0.0
    %456 = vmatprep.subr.mxu0 0.0
    %457 = vmatpush1.msra.mxu0 0.0
    %458 = vmatprep.subr.mxu0 0.0
    %459 = vmatpush1.msra.mxu0 0.0
    %460 = vmatprep.subr.mxu0 0.0
    %461 = vmatpush1.msra.mxu0 0.0
    %462 = vmatprep.subr.mxu0 0.0
    %463 = vmatpush1.msra.mxu0 0.0
    %464 = vmatprep.subr.mxu0 0.0
    %465 = vmatpush1.msra.mxu0 0.0
    %466 = vmatprep.subr.mxu0 0.0
    %467 = vmatpush1.msra.mxu0 0.0
    %468 = vmatprep.subr.mxu0 0.0
    %469 = vmatpush1.msra.mxu0 0.0
    %470 = vmatprep.subr.mxu0 0.0
    %471 = vmatpush1.msra.mxu0 0.0
    %472 = vmatprep.subr.mxu0 0.0
    %473 = vmatpush1.msra.mxu0 0.0
    %474 = vmatprep.subr.mxu0 0.0
    %475 = vmatpush1.msra.mxu0 0.0
    %476 = vmatprep.mubr.f32.mxu0 0.0
    %v477 = vand.u32 %v148, 4294901760
    %v478 = vsub.f32 %v148, %v477
    %v479 = vand.u32 %v478, 4294901760
    %480 = vmatmul.mubr.f32.gmra.mrb[0].mxu0 %v479
    %v481 = vpop.f32.mrb[0].mxu0
    %v482 = vadd.f32 %v400, %v481
    %v483 = vpop.f32.mrb[0].mxu0
    %484 = vmatprep.mubr.f32.mxu0 0.0
    %v485 = vand.u32 %v151, 4294901760
    %v486 = vsub.f32 %v151, %v485
    %v487 = vand.u32 %v486, 4294901760
    %488 = vmatmul.mubr.f32.gmra.mrb[0].mxu0 %v487
    %v489 = vpop.f32.mrb[0].mxu0
    %v490 = vadd.f32 %v407, %v489
    %v491 = vpop.f32.mrb[0].mxu0
    %492 = vdwg.mxu0
    %493 = vmatprep.subr.mxu0 0.0
    %v494 = vand.u32 %v142, 4294901760
    %v495 = vsub.f32 %v142, %v494
    %v496 = vand.u32 %v495, 4294901760
    %497 = vmatpush1.msra.mxu0 %v496
    %498 = vmatprep.subr.mxu0 0.0
    %v499 = vand.u32 %v143, 4294901760
    %v500 = vsub.f32 %v143, %v499
    %v501 = vand.u32 %v500, 4294901760
    %502 = vmatpush1.msra.mxu0 %v501
    %503 = vmatprep.subr.mxu0 0.0
    %504 = vmatpush1.msra.mxu0 0.0
    %505 = vmatprep.subr.mxu0 0.0
    %506 = vmatpush1.msra.mxu0 0.0
    %507 = vmatprep.subr.mxu0 0.0
    %508 = vmatpush1.msra.mxu0 0.0
    %509 = vmatprep.subr.mxu0 0.0
    %510 = vmatpush1.msra.mxu0 0.0
    %511 = vmatprep.subr.mxu0 0.0
    %512 = vmatpush1.msra.mxu0 0.0
    %513 = vmatprep.subr.mxu0 0.0
    %514 = vmatpush1.msra.mxu0 0.0
    %515 = vmatprep.subr.mxu0 0.0
    %516 = vmatpush1.msra.mxu0 0.0
    %517 = vmatprep.subr.mxu0 0.0
    %518 = vmatpush1.msra.mxu0 0.0
    %519 = vmatprep.subr.mxu0 0.0
    %520 = vmatpush1.msra.mxu0 0.0
    %521 = vmatprep.subr.mxu0 0.0
    %522 = vmatpush1.msra.mxu0 0.0
    %523 = vmatprep.subr.mxu0 0.0
    %524 = vmatpush1.msra.mxu0 0.0
    %525 = vmatprep.subr.mxu0 0.0
    %526 = vmatpush1.msra.mxu0 0.0
    %527 = vmatprep.subr.mxu0 0.0
    %528 = vmatpush1.msra.mxu0 0.0
    %529 = vmatprep.subr.mxu0 0.0
    %530 = vmatpush1.msra.mxu0 0.0
    %531 = vmatprep.subr.mxu0 0.0
    %532 = vmatpush1.msra.mxu0 0.0
    %533 = vmatprep.subr.mxu0 0.0
    %534 = vmatpush1.msra.mxu0 0.0
    %535 = vmatprep.subr.mxu0 0.0
    %536 = vmatpush1.msra.mxu0 0.0
    %537 = vmatprep.subr.mxu0 0.0
    %538 = vmatpush1.msra.mxu0 0.0
    %539 = vmatprep.subr.mxu0 0.0
    %540 = vmatpush1.msra.mxu0 0.0
    %541 = vmatprep.subr.mxu0 0.0
    %542 = vmatpush1.msra.mxu0 0.0
    %543 = vmatprep.subr.mxu0 0.0
    %544 = vmatpush1.msra.mxu0 0.0
    %545 = vmatprep.subr.mxu0 0.0
    %546 = vmatpush1.msra.mxu0 0.0
    %547 = vmatprep.subr.mxu0 0.0
    %548 = vmatpush1.msra.mxu0 0.0
    %549 = vmatprep.subr.mxu0 0.0
    %550 = vmatpush1.msra.mxu0 0.0
    %551 = vmatprep.subr.mxu0 0.0
    %552 = vmatpush1.msra.mxu0 0.0
    %553 = vmatprep.subr.mxu0 0.0
    %554 = vmatpush1.msra.mxu0 0.0
    %555 = vmatprep.subr.mxu0 0.0
    %556 = vmatpush1.msra.mxu0 0.0
    %557 = vmatprep.subr.mxu0 0.0
    %558 = vmatpush1.msra.mxu0 0.0
    %559 = vmatprep.subr.mxu0 0.0
    %560 = vmatpush1.msra.mxu0 0.0
    %561 = vmatprep.subr.mxu0 0.0
    %562 = vmatpush1.msra.mxu0 0.0
    %563 = vmatprep.mubr.f32.mxu0 0.0
    %v564 = vand.u32 %v148, 4294901760
    %565 = vmatmul.mubr.f32.gmra.mrb[0].mxu0 %v564
    %v566 = vpop.f32.mrb[0].mxu0
    %v567 = vadd.f32 %v482, %v566
    %v568 = vpop.f32.mrb[0].mxu0
    %569 = vmatprep.mubr.f32.mxu0 0.0
    %v570 = vand.u32 %v151, 4294901760
    %571 = vmatmul.mubr.f32.gmra.mrb[0].mxu0 %v570
    %v572 = vpop.f32.mrb[0].mxu0
    %v573 = vadd.f32 %v490, %v572
    %v574 = vpop.f32.mrb[0].mxu0
    %575 = vdwg.mxu0
    %576 = vmatprep.subr.mxu0 0.0
    %v577 = vand.u32 %v142, 4294901760
    %578 = vmatpush1.msra.mxu0 %v577
    %579 = vmatprep.subr.mxu0 0.0
    %v580 = vand.u32 %v143, 4294901760
    %581 = vmatpush1.msra.mxu0 %v580
    %582 = vmatprep.subr.mxu0 0.0
    %583 = vmatpush1.msra.mxu0 0.0
    %584 = vmatprep.subr.mxu0 0.0
    %585 = vmatpush1.msra.mxu0 0.0
    %586 = vmatprep.subr.mxu0 0.0
    %587 = vmatpush1.msra.mxu0 0.0
    %588 = vmatprep.subr.mxu0 0.0
    %589 = vmatpush1.msra.mxu0 0.0
    %590 = vmatprep.subr.mxu0 0.0
    %591 = vmatpush1.msra.mxu0 0.0
    %592 = vmatprep.subr.mxu0 0.0
    %593 = vmatpush1.msra.mxu0 0.0
    %594 = vmatprep.subr.mxu0 0.0
    %595 = vmatpush1.msra.mxu0 0.0
    %596 = vmatprep.subr.mxu0 0.0
    %597 = vmatpush1.msra.mxu0 0.0
    %598 = vmatprep.subr.mxu0 0.0
    %599 = vmatpush1.msra.mxu0 0.0
    %600 = vmatprep.subr.mxu0 0.0
    %601 = vmatpush1.msra.mxu0 0.0
    %602 = vmatprep.subr.mxu0 0.0
    %603 = vmatpush1.msra.mxu0 0.0
    %604 = vmatprep.subr.mxu0 0.0
    %605 = vmatpush1.msra.mxu0 0.0
    %606 = vmatprep.subr.mxu0 0.0
    %607 = vmatpush1.msra.mxu0 0.0
    %608 = vmatprep.subr.mxu0 0.0
    %609 = vmatpush1.msra.mxu0 0.0
    %610 = vmatprep.subr.mxu0 0.0
    %611 = vmatpush1.msra.mxu0 0.0
    %612 = vmatprep.subr.mxu0 0.0
    %613 = vmatpush1.msra.mxu0 0.0
    %614 = vmatprep.subr.mxu0 0.0
    %615 = vmatpush1.msra.mxu0 0.0
    %616 = vmatprep.subr.mxu0 0.0
    %617 = vmatpush1.msra.mxu0 0.0
    %618 = vmatprep.subr.mxu0 0.0
    %619 = vmatpush1.msra.mxu0 0.0
    %620 = vmatprep.subr.mxu0 0.0
    %621 = vmatpush1.msra.mxu0 0.0
    %622 = vmatprep.subr.mxu0 0.0
    %623 = vmatpush1.msra.mxu0 0.0
    %624 = vmatprep.subr.mxu0 0.0
    %625 = vmatpush1.msra.mxu0 0.0
    %626 = vmatprep.subr.mxu0 0.0
    %627 = vmatpush1.msra.mxu0 0.0
    %628 = vmatprep.subr.mxu0 0.0
    %629 = vmatpush1.msra.mxu0 0.0
    %630 = vmatprep.subr.mxu0 0.0
    %631 = vmatpush1.msra.mxu0 0.0
    %632 = vmatprep.subr.mxu0 0.0
    %633 = vmatpush1.msra.mxu0 0.0
    %634 = vmatprep.subr.mxu0 0.0
    %635 = vmatpush1.msra.mxu0 0.0
    %636 = vmatprep.subr.mxu0 0.0
    %637 = vmatpush1.msra.mxu0 0.0
    %638 = vmatprep.subr.mxu0 0.0
    %639 = vmatpush1.msra.mxu0 0.0
    %640 = vmatprep.subr.mxu0 0.0
    %641 = vmatpush1.msra.mxu0 0.0
    %642 = vmatprep.mubr.f32.mxu0 0.0
    %v643 = vand.u32 %v148, 4294901760
    %644 = vmatmul.mubr.f32.gmra.mrb[0].mxu0 %v643
    %v645 = vpop.f32.mrb[0].mxu0
    %v646 = vadd.f32 %v567, %v645
    %v647 = vpop.f32.mrb[0].mxu0
    %648 = vmatprep.mubr.f32.mxu0 0.0
    %v649 = vand.u32 %v151, 4294901760
    %650 = vmatmul.mubr.f32.gmra.mrb[0].mxu0 %v649
    %v651 = vpop.f32.mrb[0].mxu0
    %v652 = vadd.f32 %v573, %v651
    %v653 = vpop.f32.mrb[0].mxu0
    %654 = vdwg.mxu0
    %v655 = vmax.f32 %v646, 0.0
    %v656 = vmax.f32 %v652, 0.0
    %v657 = vld [vmem:[#allocation13 + $0x20] sm:$0xff]
    %v658 = vld [vmem:[#allocation13 + $0x28] sm:$0xff]
    %v659 = vmul.f32 %v655, %v657
    %v660 = vmul.f32 %v656, %v658
    %v661 = vadd.f32 %v659, %v660
    %v662 = vrot.slane %v661, 4
    %v663 = vadd.f32 %v661, %v662
    %v664 = vrot.slane %v663, 2
    %v665 = vadd.f32 %v663, %v664
    %v666 = vrot.slane %v665, 1
    %v667 = vadd.f32 %v665, %v666
    %v668 = vld [vmem:[#allocation13 + $0x30] sm:$0xff]
    %v669 = vld [vmem:[#allocation13 + $0x38] sm:$0xff]
    %v670 = vmul.f32 %v655, %v668
    %v671 = vmul.f32 %v656, %v669
    %v672 = vadd.f32 %v670, %v671
    %v673 = vrot.slane %v672, 4
    %v674 = vadd.f32 %v672, %v673
    %v675 = vrot.slane %v674, 2
    %v676 = vadd.f32 %v674, %v675
    %v677 = vrot.slane %v676, 1
    %v678 = vadd.f32 %v676, %v677
    %v679 = vld [vmem:[#allocation13 + $0x40] sm:$0xff]
    %v680 = vld [vmem:[#allocation13 + $0x48] sm:$0xff]
    %v681 = vmul.f32 %v655, %v679
    %v682 = vmul.f32 %v656, %v680
    %v683 = vadd.f32 %v681, %v682
    %v684 = vrot.slane %v683, 4
    %v685 = vadd.f32 %v683, %v684
    %v686 = vrot.slane %v685, 2
    %v687 = vadd.f32 %v685, %v686
    %v688 = vrot.slane %v687, 1
    %v689 = vadd.f32 %v687, %v688
    %vm690 = vcmask 1040384
    %v691 = vsel %vm690, %v667, %v678
    %vm692 = vcmask 1041408
    %v693 = vsel %vm692, %v691, %v689
    %v694 = vld [vmem:[#allocation13 + $0x50] sm:$0x3]
    %v695 = vld [vmem:[#allocation13 + $0x52] sm:$0x1]
    %v696 = vlaneseq
    %v697 = vshrl.u32 %v696, 7
    %v698 = vsub.s32 0, %v697
    %v699 = vrot.slane %v695, %v698
    %700 = vmatprep.subr.mxu0 0.0
    %v701 = vand.u32 %v693, 4294901760
    %702 = vmatpush1.xpose.msra.mxu0 %v701
    %703 = vmatprep.subr.mxu0 0.0
    %704 = vmatpush1.xpose.msra.mxu0 0.0
    %705 = vmatprep.subr.mxu0 0.0
    %706 = vmatpush1.xpose.msra.mxu0 0.0
    %707 = vmatprep.subr.mxu0 0.0
    %708 = vmatpush1.xpose.msra.mxu0 0.0
    %709 = vmatprep.subr.mxu0 0.0
    %710 = vmatpush1.xpose.msra.mxu0 0.0
    %711 = vmatprep.subr.mxu0 0.0
    %712 = vmatpush1.xpose.msra.mxu0 0.0
    %713 = vmatprep.subr.mxu0 0.0
    %714 = vmatpush1.xpose.msra.mxu0 0.0
    %715 = vmatprep.subr.mxu0 0.0
    %716 = vmatpush1.xpose.msra.mxu0 0.0
    %717 = vmatprep.subr.mxu0 0.0
    %718 = vmatpush1.xpose.msra.mxu0 0.0
    %719 = vmatprep.subr.mxu0 0.0
    %720 = vmatpush1.xpose.msra.mxu0 0.0
    %721 = vmatprep.subr.mxu0 0.0
    %722 = vmatpush1.xpose.msra.mxu0 0.0
    %723 = vmatprep.subr.mxu0 0.0
    %724 = vmatpush1.xpose.msra.mxu0 0.0
    %725 = vmatprep.subr.mxu0 0.0
    %726 = vmatpush1.xpose.msra.mxu0 0.0
    %727 = vmatprep.subr.mxu0 0.0
    %728 = vmatpush1.xpose.msra.mxu0 0.0
    %729 = vmatprep.subr.mxu0 0.0
    %730 = vmatpush1.xpose.msra.mxu0 0.0
    %731 = vmatprep.subr.mxu0 0.0
    %732 = vmatpush1.xpose.msra.mxu0 0.0
    %733 = vmatprep.subr.mxu0 0.0
    %734 = vmatpush1.xpose.msra.mxu0 0.0
    %735 = vmatprep.subr.mxu0 0.0
    %736 = vmatpush1.xpose.msra.mxu0 0.0
    %737 = vmatprep.subr.mxu0 0.0
    %738 = vmatpush1.xpose.msra.mxu0 0.0
    %739 = vmatprep.subr.mxu0 0.0
    %740 = vmatpush1.xpose.msra.mxu0 0.0
    %741 = vmatprep.subr.mxu0 0.0
    %742 = vmatpush1.xpose.msra.mxu0 0.0
    %743 = vmatprep.subr.mxu0 0.0
    %744 = vmatpush1.xpose.msra.mxu0 0.0
    %745 = vmatprep.subr.mxu0 0.0
    %746 = vmatpush1.xpose.msra.mxu0 0.0
    %747 = vmatprep.subr.mxu0 0.0
    %748 = vmatpush1.xpose.msra.mxu0 0.0
    %749 = vmatprep.subr.mxu0 0.0
    %750 = vmatpush1.xpose.msra.mxu0 0.0
    %751 = vmatprep.subr.mxu0 0.0
    %752 = vmatpush1.xpose.msra.mxu0 0.0
    %753 = vmatprep.subr.mxu0 0.0
    %754 = vmatpush1.xpose.msra.mxu0 0.0
    %755 = vmatprep.subr.mxu0 0.0
    %756 = vmatpush1.xpose.msra.mxu0 0.0
    %757 = vmatprep.subr.mxu0 0.0
    %758 = vmatpush1.xpose.msra.mxu0 0.0
    %759 = vmatprep.subr.mxu0 0.0
    %760 = vmatpush1.xpose.msra.mxu0 0.0
    %761 = vmatprep.subr.mxu0 0.0
    %762 = vmatpush1.xpose.msra.mxu0 0.0
    %763 = vmatprep.subr.mxu0 0.0
    %764 = vmatpush1.xpose.msra.mxu0 0.0
    %765 = vmatprep.mubr.f32.mxu0 0.0
    %v766 = vand.u32 %v694, 4294901760
    %v767 = vsub.f32 %v694, %v766
    %v768 = vand.u32 %v767, 4294901760
    %v769 = vsub.f32 %v767, %v768
    %v770 = vand.u32 %v769, 4294901760
    %771 = vmatmul.mubr.f32.gmra.mrb[0].mxu0 %v770
    %v772 = vpop.f32.mrb[0].mxu0
    %v773 = vadd.f32 %v699, %v772
    %v774 = vpop.f32.mrb[0].mxu0
    %775 = vdwg.mxu0
    %776 = vmatprep.subr.mxu0 0.0
    %v777 = vand.u32 %v693, 4294901760
    %v778 = vsub.f32 %v693, %v777
    %v779 = vand.u32 %v778, 4294901760
    %v780 = vsub.f32 %v778, %v779
    %v781 = vand.u32 %v780, 4294901760
    %782 = vmatpush1.xpose.msra.mxu0 %v781
    %783 = vmatprep.subr.mxu0 0.0
    %784 = vmatpush1.xpose.msra.mxu0 0.0
    %785 = vmatprep.subr.mxu0 0.0
    %786 = vmatpush1.xpose.msra.mxu0 0.0
    %787 = vmatprep.subr.mxu0 0.0
    %788 = vmatpush1.xpose.msra.mxu0 0.0
    %789 = vmatprep.subr.mxu0 0.0
    %790 = vmatpush1.xpose.msra.mxu0 0.0
    %791 = vmatprep.subr.mxu0 0.0
    %792 = vmatpush1.xpose.msra.mxu0 0.0
    %793 = vmatprep.subr.mxu0 0.0
    %794 = vmatpush1.xpose.msra.mxu0 0.0
    %795 = vmatprep.subr.mxu0 0.0
    %796 = vmatpush1.xpose.msra.mxu0 0.0
    %797 = vmatprep.subr.mxu0 0.0
    %798 = vmatpush1.xpose.msra.mxu0 0.0
    %799 = vmatprep.subr.mxu0 0.0
    %800 = vmatpush1.xpose.msra.mxu0 0.0
    %801 = vmatprep.subr.mxu0 0.0
    %802 = vmatpush1.xpose.msra.mxu0 0.0
    %803 = vmatprep.subr.mxu0 0.0
    %804 = vmatpush1.xpose.msra.mxu0 0.0
    %805 = vmatprep.subr.mxu0 0.0
    %806 = vmatpush1.xpose.msra.mxu0 0.0
    %807 = vmatprep.subr.mxu0 0.0
    %808 = vmatpush1.xpose.msra.mxu0 0.0
    %809 = vmatprep.subr.mxu0 0.0
    %810 = vmatpush1.xpose.msra.mxu0 0.0
    %811 = vmatprep.subr.mxu0 0.0
    %812 = vmatpush1.xpose.msra.mxu0 0.0
    %813 = vmatprep.subr.mxu0 0.0
    %814 = vmatpush1.xpose.msra.mxu0 0.0
    %815 = vmatprep.subr.mxu0 0.0
    %816 = vmatpush1.xpose.msra.mxu0 0.0
    %817 = vmatprep.subr.mxu0 0.0
    %818 = vmatpush1.xpose.msra.mxu0 0.0
    %819 = vmatprep.subr.mxu0 0.0
    %820 = vmatpush1.xpose.msra.mxu0 0.0
    %821 = vmatprep.subr.mxu0 0.0
    %822 = vmatpush1.xpose.msra.mxu0 0.0
    %823 = vmatprep.subr.mxu0 0.0
    %824 = vmatpush1.xpose.msra.mxu0 0.0
    %825 = vmatprep.subr.mxu0 0.0
    %826 = vmatpush1.xpose.msra.mxu0 0.0
    %827 = vmatprep.subr.mxu0 0.0
    %828 = vmatpush1.xpose.msra.mxu0 0.0
    %829 = vmatprep.subr.mxu0 0.0
    %830 = vmatpush1.xpose.msra.mxu0 0.0
    %831 = vmatprep.subr.mxu0 0.0
    %832 = vmatpush1.xpose.msra.mxu0 0.0
    %833 = vmatprep.subr.mxu0 0.0
    %834 = vmatpush1.xpose.msra.mxu0 0.0
    %835 = vmatprep.subr.mxu0 0.0
    %836 = vmatpush1.xpose.msra.mxu0 0.0
    %837 = vmatprep.subr.mxu0 0.0
    %838 = vmatpush1.xpose.msra.mxu0 0.0
    %839 = vmatprep.subr.mxu0 0.0
    %840 = vmatpush1.xpose.msra.mxu0 0.0
    %841 = vmatprep.subr.mxu0 0.0
    %842 = vmatpush1.xpose.msra.mxu0 0.0
    %843 = vmatprep.subr.mxu0 0.0
    %844 = vmatpush1.xpose.msra.mxu0 0.0
    %845 = vmatprep.mubr.f32.mxu0 0.0
    %v846 = vand.u32 %v694, 4294901760
    %847 = vmatmul.mubr.f32.gmra.mrb[0].mxu0 %v846
    %v848 = vpop.f32.mrb[0].mxu0
    %v849 = vadd.f32 %v773, %v848
    %v850 = vpop.f32.mrb[0].mxu0
    %851 = vdwg.mxu0
    %852 = vmatprep.subr.mxu0 0.0
    %v853 = vand.u32 %v693, 4294901760
    %v854 = vsub.f32 %v693, %v853
    %855 = vmatpush1.xpose.msra.mxu0 %v854
    %856 = vmatprep.subr.mxu0 0.0
    %857 = vmatpush1.xpose.msra.mxu0 0.0
    %858 = vmatprep.subr.mxu0 0.0
    %859 = vmatpush1.xpose.msra.mxu0 0.0
    %860 = vmatprep.subr.mxu0 0.0
    %861 = vmatpush1.xpose.msra.mxu0 0.0
    %862 = vmatprep.subr.mxu0 0.0
    %863 = vmatpush1.xpose.msra.mxu0 0.0
    %864 = vmatprep.subr.mxu0 0.0
    %865 = vmatpush1.xpose.msra.mxu0 0.0
    %866 = vmatprep.subr.mxu0 0.0
    %867 = vmatpush1.xpose.msra.mxu0 0.0
    %868 = vmatprep.subr.mxu0 0.0
    %869 = vmatpush1.xpose.msra.mxu0 0.0
    %870 = vmatprep.subr.mxu0 0.0
    %871 = vmatpush1.xpose.msra.mxu0 0.0
    %872 = vmatprep.subr.mxu0 0.0
    %873 = vmatpush1.xpose.msra.mxu0 0.0
    %874 = vmatprep.subr.mxu0 0.0
    %875 = vmatpush1.xpose.msra.mxu0 0.0
    %876 = vmatprep.subr.mxu0 0.0
    %877 = vmatpush1.xpose.msra.mxu0 0.0
    %878 = vmatprep.subr.mxu0 0.0
    %879 = vmatpush1.xpose.msra.mxu0 0.0
    %880 = vmatprep.subr.mxu0 0.0
    %881 = vmatpush1.xpose.msra.mxu0 0.0
    %882 = vmatprep.subr.mxu0 0.0
    %883 = vmatpush1.xpose.msra.mxu0 0.0
    %884 = vmatprep.subr.mxu0 0.0
    %885 = vmatpush1.xpose.msra.mxu0 0.0
    %886 = vmatprep.subr.mxu0 0.0
    %887 = vmatpush1.xpose.msra.mxu0 0.0
    %888 = vmatprep.subr.mxu0 0.0
    %889 = vmatpush1.xpose.msra.mxu0 0.0
    %890 = vmatprep.subr.mxu0 0.0
    %891 = vmatpush1.xpose.msra.mxu0 0.0
    %892 = vmatprep.subr.mxu0 0.0
    %893 = vmatpush1.xpose.msra.mxu0 0.0
    %894 = vmatprep.subr.mxu0 0.0
    %895 = vmatpush1.xpose.msra.mxu0 0.0
    %896 = vmatprep.subr.mxu0 0.0
    %897 = vmatpush1.xpose.msra.mxu0 0.0
    %898 = vmatprep.subr.mxu0 0.0
    %899 = vmatpush1.xpose.msra.mxu0 0.0
    %900 = vmatprep.subr.mxu0 0.0
    %901 = vmatpush1.xpose.msra.mxu0 0.0
    %902 = vmatprep.subr.mxu0 0.0
    %903 = vmatpush1.xpose.msra.mxu0 0.0
    %904 = vmatprep.subr.mxu0 0.0
    %905 = vmatpush1.xpose.msra.mxu0 0.0
    %906 = vmatprep.subr.mxu0 0.0
    %907 = vmatpush1.xpose.msra.mxu0 0.0
    %908 = vmatprep.subr.mxu0 0.0
    %909 = vmatpush1.xpose.msra.mxu0 0.0
    %910 = vmatprep.subr.mxu0 0.0
    %911 = vmatpush1.xpose.msra.mxu0 0.0
    %912 = vmatprep.subr.mxu0 0.0
    %913 = vmatpush1.xpose.msra.mxu0 0.0
    %914 = vmatprep.subr.mxu0 0.0
    %915 = vmatpush1.xpose.msra.mxu0 0.0
    %916 = vmatprep.subr.mxu0 0.0
    %917 = vmatpush1.xpose.msra.mxu0 0.0
    %918 = vmatprep.mubr.f32.mxu0 0.0
    %v919 = vand.u32 %v694, 4294901760
    %v920 = vsub.f32 %v694, %v919
    %921 = vmatmul.mubr.f32.gmra.mrb[0].mxu0 %v920
    %v922 = vpop.f32.mrb[0].mxu0
    %v923 = vadd.f32 %v849, %v922
    %v924 = vpop.f32.mrb[0].mxu0
    %925 = vdwg.mxu0
    %926 = vmatprep.subr.mxu0 0.0
    %v927 = vand.u32 %v693, 4294901760
    %928 = vmatpush1.xpose.msra.mxu0 %v927
    %929 = vmatprep.subr.mxu0 0.0
    %930 = vmatpush1.xpose.msra.mxu0 0.0
    %931 = vmatprep.subr.mxu0 0.0
    %932 = vmatpush1.xpose.msra.mxu0 0.0
    %933 = vmatprep.subr.mxu0 0.0
    %934 = vmatpush1.xpose.msra.mxu0 0.0
    %935 = vmatprep.subr.mxu0 0.0
    %936 = vmatpush1.xpose.msra.mxu0 0.0
    %937 = vmatprep.subr.mxu0 0.0
    %938 = vmatpush1.xpose.msra.mxu0 0.0
    %939 = vmatprep.subr.mxu0 0.0
    %940 = vmatpush1.xpose.msra.mxu0 0.0
    %941 = vmatprep.subr.mxu0 0.0
    %942 = vmatpush1.xpose.msra.mxu0 0.0
    %943 = vmatprep.subr.mxu0 0.0
    %944 = vmatpush1.xpose.msra.mxu0 0.0
    %945 = vmatprep.subr.mxu0 0.0
    %946 = vmatpush1.xpose.msra.mxu0 0.0
    %947 = vmatprep.subr.mxu0 0.0
    %948 = vmatpush1.xpose.msra.mxu0 0.0
    %949 = vmatprep.subr.mxu0 0.0
    %950 = vmatpush1.xpose.msra.mxu0 0.0
    %951 = vmatprep.subr.mxu0 0.0
    %952 = vmatpush1.xpose.msra.mxu0 0.0
    %953 = vmatprep.subr.mxu0 0.0
    %954 = vmatpush1.xpose.msra.mxu0 0.0
    %955 = vmatprep.subr.mxu0 0.0
    %956 = vmatpush1.xpose.msra.mxu0 0.0
    %957 = vmatprep.subr.mxu0 0.0
    %958 = vmatpush1.xpose.msra.mxu0 0.0
    %959 = vmatprep.subr.mxu0 0.0
    %960 = vmatpush1.xpose.msra.mxu0 0.0
    %961 = vmatprep.subr.mxu0 0.0
    %962 = vmatpush1.xpose.msra.mxu0 0.0
    %963 = vmatprep.subr.mxu0 0.0
    %964 = vmatpush1.xpose.msra.mxu0 0.0
    %965 = vmatprep.subr.mxu0 0.0
    %966 = vmatpush1.xpose.msra.mxu0 0.0
    %967 = vmatprep.subr.mxu0 0.0
    %968 = vmatpush1.xpose.msra.mxu0 0.0
    %969 = vmatprep.subr.mxu0 0.0
    %970 = vmatpush1.xpose.msra.mxu0 0.0
    %971 = vmatprep.subr.mxu0 0.0
    %972 = vmatpush1.xpose.msra.mxu0 0.0
    %973 = vmatprep.subr.mxu0 0.0
    %974 = vmatpush1.xpose.msra.mxu0 0.0
    %975 = vmatprep.subr.mxu0 0.0
    %976 = vmatpush1.xpose.msra.mxu0 0.0
    %977 = vmatprep.subr.mxu0 0.0
    %978 = vmatpush1.xpose.msra.mxu0 0.0
    %979 = vmatprep.subr.mxu0 0.0
    %980 = vmatpush1.xpose.msra.mxu0 0.0
    %981 = vmatprep.subr.mxu0 0.0
    %982 = vmatpush1.xpose.msra.mxu0 0.0
    %983 = vmatprep.subr.mxu0 0.0
    %984 = vmatpush1.xpose.msra.mxu0 0.0
    %985 = vmatprep.subr.mxu0 0.0
    %986 = vmatpush1.xpose.msra.mxu0 0.0
    %987 = vmatprep.subr.mxu0 0.0
    %988 = vmatpush1.xpose.msra.mxu0 0.0
    %989 = vmatprep.subr.mxu0 0.0
    %990 = vmatpush1.xpose.msra.mxu0 0.0
    %991 = vmatprep.mubr.f32.mxu0 0.0
    %v992 = vand.u32 %v694, 4294901760
    %v993 = vsub.f32 %v694, %v992
    %v994 = vand.u32 %v993, 4294901760
    %995 = vmatmul.mubr.f32.gmra.mrb[0].mxu0 %v994
    %v996 = vpop.f32.mrb[0].mxu0
    %v997 = vadd.f32 %v923, %v996
    %v998 = vpop.f32.mrb[0].mxu0
    %999 = vdwg.mxu0
    %1000 = vmatprep.subr.mxu0 0.0
    %v1001 = vand.u32 %v693, 4294901760
    %v1002 = vsub.f32 %v693, %v1001
    %v1003 = vand.u32 %v1002, 4294901760
    %1004 = vmatpush1.xpose.msra.mxu0 %v1003
    %1005 = vmatprep.subr.mxu0 0.0
    %1006 = vmatpush1.xpose.msra.mxu0 0.0
    %1007 = vmatprep.subr.mxu0 0.0
    %1008 = vmatpush1.xpose.msra.mxu0 0.0
    %1009 = vmatprep.subr.mxu0 0.0
    %1010 = vmatpush1.xpose.msra.mxu0 0.0
    %1011 = vmatprep.subr.mxu0 0.0
    %1012 = vmatpush1.xpose.msra.mxu0 0.0
    %1013 = vmatprep.subr.mxu0 0.0
    %1014 = vmatpush1.xpose.msra.mxu0 0.0
    %1015 = vmatprep.subr.mxu0 0.0
    %1016 = vmatpush1.xpose.msra.mxu0 0.0
    %1017 = vmatprep.subr.mxu0 0.0
    %1018 = vmatpush1.xpose.msra.mxu0 0.0
    %1019 = vmatprep.subr.mxu0 0.0
    %1020 = vmatpush1.xpose.msra.mxu0 0.0
    %1021 = vmatprep.subr.mxu0 0.0
    %1022 = vmatpush1.xpose.msra.mxu0 0.0
    %1023 = vmatprep.subr.mxu0 0.0
    %1024 = vmatpush1.xpose.msra.mxu0 0.0
    %1025 = vmatprep.subr.mxu0 0.0
    %1026 = vmatpush1.xpose.msra.mxu0 0.0
    %1027 = vmatprep.subr.mxu0 0.0
    %1028 = vmatpush1.xpose.msra.mxu0 0.0
    %1029 = vmatprep.subr.mxu0 0.0
    %1030 = vmatpush1.xpose.msra.mxu0 0.0
    %1031 = vmatprep.subr.mxu0 0.0
    %1032 = vmatpush1.xpose.msra.mxu0 0.0
    %1033 = vmatprep.subr.mxu0 0.0
    %1034 = vmatpush1.xpose.msra.mxu0 0.0
    %1035 = vmatprep.subr.mxu0 0.0
    %1036 = vmatpush1.xpose.msra.mxu0 0.0
    %1037 = vmatprep.subr.mxu0 0.0
    %1038 = vmatpush1.xpose.msra.mxu0 0.0
    %1039 = vmatprep.subr.mxu0 0.0
    %1040 = vmatpush1.xpose.msra.mxu0 0.0
    %1041 = vmatprep.subr.mxu0 0.0
    %1042 = vmatpush1.xpose.msra.mxu0 0.0
    %1043 = vmatprep.subr.mxu0 0.0
    %1044 = vmatpush1.xpose.msra.mxu0 0.0
    %1045 = vmatprep.subr.mxu0 0.0
    %1046 = vmatpush1.xpose.msra.mxu0 0.0
    %1047 = vmatprep.subr.mxu0 0.0
    %1048 = vmatpush1.xpose.msra.mxu0 0.0
    %1049 = vmatprep.subr.mxu0 0.0
    %1050 = vmatpush1.xpose.msra.mxu0 0.0
    %1051 = vmatprep.subr.mxu0 0.0
    %1052 = vmatpush1.xpose.msra.mxu0 0.0
    %1053 = vmatprep.subr.mxu0 0.0
    %1054 = vmatpush1.xpose.msra.mxu0 0.0
    %1055 = vmatprep.subr.mxu0 0.0
    %1056 = vmatpush1.xpose.msra.mxu0 0.0
    %1057 = vmatprep.subr.mxu0 0.0
    %1058 = vmatpush1.xpose.msra.mxu0 0.0
    %1059 = vmatprep.subr.mxu0 0.0
    %1060 = vmatpush1.xpose.msra.mxu0 0.0
    %1061 = vmatprep.subr.mxu0 0.0
    %1062 = vmatpush1.xpose.msra.mxu0 0.0
    %1063 = vmatprep.subr.mxu0 0.0
    %1064 = vmatpush1.xpose.msra.mxu0 0.0
    %1065 = vmatprep.subr.mxu0 0.0
    %1066 = vmatpush1.xpose.msra.mxu0 0.0
    %1067 = vmatprep.mubr.f32.mxu0 0.0
    %v1068 = vand.u32 %v694, 4294901760
    %1069 = vmatmul.mubr.f32.gmra.mrb[0].mxu0 %v1068
    %v1070 = vpop.f32.mrb[0].mxu0
    %v1071 = vadd.f32 %v997, %v1070
    %v1072 = vpop.f32.mrb[0].mxu0
    %1073 = vdwg.mxu0
    %1074 = vmatprep.subr.mxu0 0.0
    %v1075 = vand.u32 %v693, 4294901760
    %1076 = vmatpush1.xpose.msra.mxu0 %v1075
    %1077 = vmatprep.subr.mxu0 0.0
    %1078 = vmatpush1.xpose.msra.mxu0 0.0
    %1079 = vmatprep.subr.mxu0 0.0
    %1080 = vmatpush1.xpose.msra.mxu0 0.0
    %1081 = vmatprep.subr.mxu0 0.0
    %1082 = vmatpush1.xpose.msra.mxu0 0.0
    %1083 = vmatprep.subr.mxu0 0.0
    %1084 = vmatpush1.xpose.msra.mxu0 0.0
    %1085 = vmatprep.subr.mxu0 0.0
    %1086 = vmatpush1.xpose.msra.mxu0 0.0
    %1087 = vmatprep.subr.mxu0 0.0
    %1088 = vmatpush1.xpose.msra.mxu0 0.0
    %1089 = vmatprep.subr.mxu0 0.0
    %1090 = vmatpush1.xpose.msra.mxu0 0.0
    %1091 = vmatprep.subr.mxu0 0.0
    %1092 = vmatpush1.xpose.msra.mxu0 0.0
    %1093 = vmatprep.subr.mxu0 0.0
    %1094 = vmatpush1.xpose.msra.mxu0 0.0
    %1095 = vmatprep.subr.mxu0 0.0
    %1096 = vmatpush1.xpose.msra.mxu0 0.0
    %1097 = vmatprep.subr.mxu0 0.0
    %1098 = vmatpush1.xpose.msra.mxu0 0.0
    %1099 = vmatprep.subr.mxu0 0.0
    %1100 = vmatpush1.xpose.msra.mxu0 0.0
    %1101 = vmatprep.subr.mxu0 0.0
    %1102 = vmatpush1.xpose.msra.mxu0 0.0
    %1103 = vmatprep.subr.mxu0 0.0
    %1104 = vmatpush1.xpose.msra.mxu0 0.0
    %1105 = vmatprep.subr.mxu0 0.0
    %1106 = vmatpush1.xpose.msra.mxu0 0.0
    %1107 = vmatprep.subr.mxu0 0.0
    %1108 = vmatpush1.xpose.msra.mxu0 0.0
    %1109 = vmatprep.subr.mxu0 0.0
    %1110 = vmatpush1.xpose.msra.mxu0 0.0
    %1111 = vmatprep.subr.mxu0 0.0
    %1112 = vmatpush1.xpose.msra.mxu0 0.0
    %1113 = vmatprep.subr.mxu0 0.0
    %1114 = vmatpush1.xpose.msra.mxu0 0.0
    %1115 = vmatprep.subr.mxu0 0.0
    %1116 = vmatpush1.xpose.msra.mxu0 0.0
    %1117 = vmatprep.subr.mxu0 0.0
    %1118 = vmatpush1.xpose.msra.mxu0 0.0
    %1119 = vmatprep.subr.mxu0 0.0
    %1120 = vmatpush1.xpose.msra.mxu0 0.0
    %1121 = vmatprep.subr.mxu0 0.0
    %1122 = vmatpush1.xpose.msra.mxu0 0.0
    %1123 = vmatprep.subr.mxu0 0.0
    %1124 = vmatpush1.xpose.msra.mxu0 0.0
    %1125 = vmatprep.subr.mxu0 0.0
    %1126 = vmatpush1.xpose.msra.mxu0 0.0
    %1127 = vmatprep.subr.mxu0 0.0
    %1128 = vmatpush1.xpose.msra.mxu0 0.0
    %1129 = vmatprep.subr.mxu0 0.0
    %1130 = vmatpush1.xpose.msra.mxu0 0.0
    %1131 = vmatprep.subr.mxu0 0.0
    %1132 = vmatpush1.xpose.msra.mxu0 0.0
    %1133 = vmatprep.subr.mxu0 0.0
    %1134 = vmatpush1.xpose.msra.mxu0 0.0
    %1135 = vmatprep.subr.mxu0 0.0
    %1136 = vmatpush1.xpose.msra.mxu0 0.0
    %1137 = vmatprep.subr.mxu0 0.0
    %1138 = vmatpush1.xpose.msra.mxu0 0.0
    %1139 = vmatprep.mubr.f32.mxu0 0.0
    %v1140 = vand.u32 %v694, 4294901760
    %1141 = vmatmul.mubr.f32.gmra.mrb[0].mxu0 %v1140
    %v1142 = vpop.f32.mrb[0].mxu0
    %v1143 = vadd.f32 %v1071, %v1142
    %v1144 = vpop.f32.mrb[0].mxu0
    %1145 = vdwg.mxu0
    %1146 = vst [vmem:[%s3] sm:$0xff] 0.0
    %vm1147 = vcmask 17408
    %1148 = vst.msk [vmem:[%s3] sm:$0x3] %vm1147, %v1143
    // Predicated region
    $region10: #{audio_cnn_forward.2} parent=1 // pred_check
      _
    $region11: #{audio_cnn_forward.2} parent=1 // pred_check_branch
      %1150 = sbr.rel (0) target = $region13
    $region12: #{audio_cnn_forward.2} parent=1 // pred_region
      _
    $region13: #{audio_cnn_forward.2} parent=1 // pred_fallthru
      _
    // Predicated region
    $region14: #{audio_cnn_forward.2} parent=1 // pred_check
      _
    $region15: #{audio_cnn_forward.2} parent=1 // pred_check_branch
      %1152 = sbr.rel (0) target = $region17
    $region16: #{audio_cnn_forward.2} parent=1 // pred_region
      _
    $region17: #{audio_cnn_forward.2} parent=1 // pred_fallthru
      _

</llo_original>
